<compile_context>
chip_gen: v7x
topology: tpu7x:2x2x1
jax: 0.10.0
libtpu: 0.0.40
codegen_flags: <defaults>
</compile_context>

<pallas_src>
import jax
import jax.numpy as jnp
from jax.experimental import pallas as pl
from jax.experimental.pallas import tpu as pltpu


# ----------------------------------------------------------------------------
# Kernel
# ----------------------------------------------------------------------------
def _lstm_encoder_kernel(x_ref, lens_ref, b_ref, wih_hbm, whh_hbm, out_ref,
                         wih_vmem, whh_vmem, copy_sem, h_scr, c_scr, gx_scr):
    """One grid step == Tc timesteps of the LSTM recurrence for one batch tile.

    x_ref   : (Tc, Bc, I)   f32 input chunk (time-major)
    lens_ref: (Bc, 1)       int32 sequence lengths for this batch tile
    b_ref   : (1, 4Hp)      f32 bias (b_ih + b_hh), gate-padded
    wih_hbm : (I, 4Hp)      bf16 W_ih^T in HBM (memory_space=ANY)
    whh_hbm : (Hp, 4Hp)     bf16 W_hh^T in HBM (memory_space=ANY)
    out_ref : (Tc, Bc, Hp)  f32 outputs for this chunk
    wih_vmem/whh_vmem       single-buffered resident weight copies in VMEM
    h_scr/c_scr             (Bc, Hp) f32 recurrent state, carried across chunks
    gx_scr  : (Tc*Bc, 4Hp)  f32 hoisted input projection for this chunk
    """
    t_chunk = pl.program_id(1)
    Tc, Bc, _ = x_ref.shape
    Hp = h_scr.shape[-1]

    # Start of this batch-chunk's time loop: load resident weights into
    # single-buffered VMEM scratch (overlapping with the state reset) and
    # zero the recurrent state.  Keyed on program_id(1), not program_id(0),
    # so it remains correct when the parallel batch axis is split across
    # TensorCores (each core initializes its own scratch).
    @pl.when(t_chunk == 0)
    def _init():
        cp_ih = pltpu.make_async_copy(wih_hbm, wih_vmem, copy_sem.at[0])
        cp_hh = pltpu.make_async_copy(whh_hbm, whh_vmem, copy_sem.at[1])
        cp_ih.start()
        cp_hh.start()
        h_scr[...] = jnp.zeros_like(h_scr)
        c_scr[...] = jnp.zeros_like(c_scr)
        cp_ih.wait()
        cp_hh.wait()

    # Hoisted input projection: one big (Tc*Bc, I) x (I, 4Hp) MXU matmul per
    # chunk instead of a tiny (Bc, I) matmul on the serial path every step.
    # (x kept f32 in HBM so the leading-dim collapse reshape is layout-trivial;
    #  cast to the bf16 MXU input dtype only for the dot.)
    x_chunk = x_ref[...].reshape(Tc * Bc, x_ref.shape[-1]).astype(wih_vmem.dtype)
    gx_scr[...] = (
        jnp.dot(x_chunk, wih_vmem[...], preferred_element_type=jnp.float32)
        + b_ref[...])

    lens = lens_ref[...]                  # (Bc, 1) int32, hoisted out of loop
    t0 = t_chunk * Tc

    def step(tt, carry):
        row = pl.multiple_of(tt * Bc, Bc)
        gates = (gx_scr[pl.ds(row, Bc), :]
                 + jnp.dot(h_scr[...].astype(whh_vmem.dtype), whh_vmem[...],
                           preferred_element_type=jnp.float32))      # (Bc, 4Hp)
        # PyTorch gate order i, f, g, o; slices are 128-lane aligned (Hp % 128 == 0).
        i_g = jax.nn.sigmoid(gates[:, 0:Hp])
        f_g = jax.nn.sigmoid(gates[:, Hp:2 * Hp])
        g_g = jnp.tanh(gates[:, 2 * Hp:3 * Hp])
        o_g = jax.nn.sigmoid(gates[:, 3 * Hp:4 * Hp])

        c_new = f_g * c_scr[...] + i_g * g_g
        h_new = o_g * jnp.tanh(c_new)
        c_scr[...] = c_new
        h_scr[...] = h_new

        # pack/pad semantics: output is zero where t >= sent_len[b].
        mask = (lens > (t0 + tt)).astype(h_new.dtype)                # (Bc, 1)
        out_ref[tt] = (h_new * mask).astype(out_ref.dtype)           # (Bc, Hp) lane-dense
        return carry

    jax.lax.fori_loop(0, Tc, step, 0, unroll=True)


# ----------------------------------------------------------------------------
# Wrapper
# ----------------------------------------------------------------------------
def _round_up(x, m):
    return (x + m - 1) // m * m


def _pad_gate_cols(w_t, H, Hp):
    """(rows, 4H) -> (rows, 4Hp): pad each of the 4 gate blocks from H to Hp cols."""
    rows = w_t.shape[0]
    out = jnp.zeros((rows, 4 * Hp), w_t.dtype)
    for k in range(4):
        out = out.at[:, k * Hp:k * Hp + H].set(w_t[:, k * H:(k + 1) * H])
    return out


def encoder_forward(sent_variable, sent_len, w_ih, w_hh, b_ih, b_hh, *,
                    time_chunk=8, batch_chunk=8,
                    compute_dtype=jnp.bfloat16):
    """Equivalent of Encoder.forward (LSTM, 1 layer, unidirectional).

    sent_variable: (B, T, I) float32, batch-first (PyTorch convention)
    sent_len     : (B,)      int32
    w_ih         : (4H, I), w_hh: (4H, H), b_ih/b_hh: (4H,)
    returns      : (B, T, H) float32, zero past each sequence's length
    """
    B, T, I = sent_variable.shape
    H = w_ih.shape[0] // 4

    Hp = _round_up(H, 128)          # per-gate lane padding (padded units stay 0)
    Bc = batch_chunk                # multiple of 8 (sublane tile)
    Bp = _round_up(B, Bc)
    Tc = time_chunk
    Tp = _round_up(T, Tc)

    # time-major, padded input (kept f32; cast to bf16 inside the kernel).
    x_tbi = jnp.transpose(sent_variable, (1, 0, 2))                  # (T, B, I)
    x_p = jnp.pad(x_tbi, ((0, Tp - T), (0, Bp - B), (0, 0)))

    lens_p = jnp.zeros((Bp, 1), jnp.int32).at[:B, 0].set(
        sent_len.astype(jnp.int32))

    # Transposed, gate-padded, bf16 weights.  Zero padding keeps padded hidden
    # units at exactly h == c == 0, so it is semantics-preserving.
    wih_t = _pad_gate_cols(jnp.transpose(w_ih), H, Hp).astype(compute_dtype)  # (I, 4Hp)
    whh_t = _pad_gate_cols(jnp.transpose(w_hh), H, Hp)                        # (H, 4Hp)
    whh_t = jnp.pad(whh_t, ((0, Hp - H), (0, 0))).astype(compute_dtype)       # (Hp, 4Hp)
    bias = _pad_gate_cols((b_ih + b_hh).reshape(1, 4 * H), H, Hp)
    bias = bias.astype(jnp.float32)                                           # (1, 4Hp)

    grid = (Bp // Bc, Tp // Tc)

    out_p = pl.pallas_call(
        _lstm_encoder_kernel,
        out_shape=jax.ShapeDtypeStruct((Tp, Bp, Hp), jnp.float32),
        grid_spec=pltpu.PrefetchScalarGridSpec(
            num_scalar_prefetch=0,
            grid=grid,
            in_specs=[
                pl.BlockSpec((Tc, Bc, I), lambda b, t: (t, b, 0)),    # x chunk
                pl.BlockSpec((Bc, 1), lambda b, t: (b, 0)),           # lengths
                pl.BlockSpec((1, 4 * Hp), lambda b, t: (0, 0)),       # bias
                pl.BlockSpec(memory_space=pl.ANY),                    # W_ih^T (HBM)
                pl.BlockSpec(memory_space=pl.ANY),                    # W_hh^T (HBM)
            ],
            out_specs=pl.BlockSpec((Tc, Bc, Hp), lambda b, t: (t, b, 0)),
            scratch_shapes=[
                pltpu.VMEM((I, 4 * Hp), compute_dtype),       # resident W_ih^T
                pltpu.VMEM((Hp, 4 * Hp), compute_dtype),      # resident W_hh^T
                pltpu.SemaphoreType.DMA((2,)),                # weight-copy sems
                pltpu.VMEM((Bc, Hp), jnp.float32),            # h state
                pltpu.VMEM((Bc, Hp), jnp.float32),            # c state
                pltpu.VMEM((Tc * Bc, 4 * Hp), jnp.float32),   # hoisted x-projection
            ],
        ),
        compiler_params=pltpu.CompilerParams(
            # batch chunks are independent (megacore-parallel on v7x);
            # the time axis carries the recurrence -> sequential.
            dimension_semantics=("parallel", "arbitrary"),
            vmem_limit_bytes=32 * 1024 * 1024,
        ),
    )(x_p, lens_p, bias, wih_t, whh_t)

    return jnp.transpose(out_p, (1, 0, 2))[:B, :T, :H]


# ----------------------------------------------------------------------------
# Pure-JAX reference (mirrors the kernel's bf16 MXU-input quantization)
# ----------------------------------------------------------------------------
def _lstm_reference(x, lens, w_ih, w_hh, b_ih, b_hh,
                    compute_dtype=jnp.bfloat16):
    B, T, I = x.shape
    H = w_ih.shape[0] // 4
    cd = compute_dtype
    x_q = x.astype(cd)
    wih_t = jnp.transpose(w_ih).astype(cd)    # (I, 4H)
    whh_t = jnp.transpose(w_hh).astype(cd)    # (H, 4H)
    bias = (b_ih + b_hh).astype(jnp.float32)

    def step(carry, x_t):
        h, c = carry
        gates = (jnp.dot(x_t, wih_t, preferred_element_type=jnp.float32)
                 + jnp.dot(h.astype(cd), whh_t, preferred_element_type=jnp.float32)
                 + bias)
        i = jax.nn.sigmoid(gates[:, :H])
        f = jax.nn.sigmoid(gates[:, H:2 * H])
        g = jnp.tanh(gates[:, 2 * H:3 * H])
        o = jax.nn.sigmoid(gates[:, 3 * H:])
        c = f * c + i * g
        h = o * jnp.tanh(c)
        return (h, c), h

    (_, _), hs = jax.lax.scan(
        step,
        (jnp.zeros((B, H), jnp.float32), jnp.zeros((B, H), jnp.float32)),
        jnp.transpose(x_q, (1, 0, 2)))
    hs = jnp.transpose(hs, (1, 0, 2))                                # (B, T, H)
    mask = (jnp.arange(T)[None, :, None] < lens[:, None, None]).astype(hs.dtype)
    return hs * mask


# ----------------------------------------------------------------------------
# Demo / self-test
# ----------------------------------------------------------------------------
if __name__ == "__main__":
    # Small shapes: batch=2, seq=12 (exercises 2 time chunks + time padding),
    # input_size=32, hidden_size=32 (exercises gate-padding to 128 lanes).
    B, T, I, H = 2, 12, 32, 32
    key = jax.random.PRNGKey(0)
    kx, k1, k2, k3, k4 = jax.random.split(key, 5)

    # PyTorch LSTM default init: uniform(-1/sqrt(H), 1/sqrt(H))
    bound = 1.0 / (H ** 0.5)
    w_ih = jax.random.uniform(k1, (4 * H, I), jnp.float32, -bound, bound)
    w_hh = jax.random.uniform(k2, (4 * H, H), jnp.float32, -bound, bound)
    b_ih = jax.random.uniform(k3, (4 * H,), jnp.float32, -bound, bound)
    b_hh = jax.random.uniform(k4, (4 * H,), jnp.float32, -bound, bound)

    sent_variable = jax.random.normal(kx, (B, T, I), jnp.float32)
    sent_len = jnp.array([T, 5], dtype=jnp.int32)     # ragged lengths

    out = encoder_forward(sent_variable, sent_len, w_ih, w_hh, b_ih, b_hh)
    out = jax.block_until_ready(out)

    ref = _lstm_reference(sent_variable, sent_len, w_ih, w_hh, b_ih, b_hh)
    assert out.shape == (B, T, H)
    max_err = float(jnp.max(jnp.abs(out - ref)))
    assert max_err < 5e-3, f"mismatch vs reference: max abs err = {max_err}"

    print("KERNEL_OK")
</pallas_src>

<mosaic_0001>
module attributes {stable_mosaic.version = 11 : i64} {
  func.func @_lstm_encoder_kernel(%arg0: i32, %arg1: i32, %arg2: memref<8x8x32xf32, #tpu.memory_space<vmem>>, %arg3: memref<8x1xi32, #tpu.memory_space<vmem>>, %arg4: memref<1x512xf32, #tpu.memory_space<vmem>>, %arg5: memref<32x512xbf16, #tpu.memory_space<any>>, %arg6: memref<128x512xbf16, #tpu.memory_space<any>>, %arg7: memref<8x8x128xf32, #tpu.memory_space<vmem>>, %arg8: memref<32x512xbf16, #tpu.memory_space<vmem>>, %arg9: memref<128x512xbf16, #tpu.memory_space<vmem>>, %arg10: memref<2x!tpu.dma_semaphore, #tpu.memory_space<semaphore_mem>>, %arg11: memref<8x128xf32, #tpu.memory_space<vmem>>, %arg12: memref<8x128xf32, #tpu.memory_space<vmem>>, %arg13: memref<64x512xf32, #tpu.memory_space<vmem>>) attributes {dimension_semantics = [#tpu.dimension_semantics<parallel>, #tpu.dimension_semantics<arbitrary>], iteration_bounds = array<i64: 1, 2>, scalar_prefetch = 0 : i64, scratch_operands = 6 : i64, tpu.core_type = #tpu.core_type<tc>, window_params = [{transform_indices = @transform_0, window_bounds = array<i64: 8, 8, 32>}, {transform_indices = @transform_1, window_bounds = array<i64: 8, 1>}, {pipeline_mode = #tpu.pipeline_mode<synchronous>, transform_indices = @transform_2, window_bounds = array<i64: 1, 512>}, {}, {}, {transform_indices = @transform_5, window_bounds = array<i64: 8, 8, 128>}]} {
    %c0_i32 = arith.constant 0 : i32
    %0 = arith.cmpi eq, %arg1, %c0_i32 : i32
    %1 = arith.extui %0 : i1 to i32
    %c0_i32_0 = arith.constant 0 : i32
    %2 = arith.cmpi ne, %1, %c0_i32_0 : i32
    scf.if %2 {
      %c0_i32_157 = arith.constant 0 : i32
      %398 = tpu.memref_slice %arg10[%c0_i32_157] : memref<2x!tpu.dma_semaphore, #tpu.memory_space<semaphore_mem>> -> memref<1x!tpu.dma_semaphore, #tpu.memory_space<semaphore_mem>>
      %399 = tpu.memref_squeeze %398 : memref<1x!tpu.dma_semaphore, #tpu.memory_space<semaphore_mem>> -> memref<!tpu.dma_semaphore, #tpu.memory_space<semaphore_mem>>
      tpu.enqueue_dma source(%arg5 : memref<32x512xbf16, #tpu.memory_space<any>>) target(%arg8 : memref<32x512xbf16, #tpu.memory_space<vmem>>) target_semaphore(%399 : memref<!tpu.dma_semaphore, #tpu.memory_space<semaphore_mem>>)
      %c1_i32_158 = arith.constant 1 : i32
      %400 = tpu.memref_slice %arg10[%c1_i32_158] : memref<2x!tpu.dma_semaphore, #tpu.memory_space<semaphore_mem>> -> memref<1x!tpu.dma_semaphore, #tpu.memory_space<semaphore_mem>>
      %401 = tpu.memref_squeeze %400 : memref<1x!tpu.dma_semaphore, #tpu.memory_space<semaphore_mem>> -> memref<!tpu.dma_semaphore, #tpu.memory_space<semaphore_mem>>
      tpu.enqueue_dma source(%arg6 : memref<128x512xbf16, #tpu.memory_space<any>>) target(%arg9 : memref<128x512xbf16, #tpu.memory_space<vmem>>) target_semaphore(%401 : memref<!tpu.dma_semaphore, #tpu.memory_space<semaphore_mem>>)
      %cst_159 = arith.constant 0.000000e+00 : f32
      %402 = vector.broadcast %cst_159 : f32 to vector<8x128xf32>
      %c0_160 = arith.constant 0 : index
      %c0_161 = arith.constant 0 : index
      %403 = vector.load %arg11[%c0_160, %c0_161] : memref<8x128xf32, #tpu.memory_space<vmem>>, vector<8x128xf32>
      tpu.vector_store %arg11[%c0_160, %c0_161], %402 {strides = array<i32>} : memref<8x128xf32, #tpu.memory_space<vmem>>, vector<8x128xf32>,
      %cst_162 = arith.constant 0.000000e+00 : f32
      %404 = vector.broadcast %cst_162 : f32 to vector<8x128xf32>
      %c0_163 = arith.constant 0 : index
      %c0_164 = arith.constant 0 : index
      %405 = vector.load %arg12[%c0_163, %c0_164] : memref<8x128xf32, #tpu.memory_space<vmem>>, vector<8x128xf32>
      tpu.vector_store %arg12[%c0_163, %c0_164], %404 {strides = array<i32>} : memref<8x128xf32, #tpu.memory_space<vmem>>, vector<8x128xf32>,
      %c0_i32_165 = arith.constant 0 : i32
      %406 = tpu.memref_slice %arg10[%c0_i32_165] : memref<2x!tpu.dma_semaphore, #tpu.memory_space<semaphore_mem>> -> memref<1x!tpu.dma_semaphore, #tpu.memory_space<semaphore_mem>>
      %407 = tpu.memref_squeeze %406 : memref<1x!tpu.dma_semaphore, #tpu.memory_space<semaphore_mem>> -> memref<!tpu.dma_semaphore, #tpu.memory_space<semaphore_mem>>
      tpu.wait_dma2 semaphore(%407 : memref<!tpu.dma_semaphore, #tpu.memory_space<semaphore_mem>>) src(%arg5 : memref<32x512xbf16, #tpu.memory_space<any>>) dst(%arg8 : memref<32x512xbf16, #tpu.memory_space<vmem>>)
      %c1_i32_166 = arith.constant 1 : i32
      %408 = tpu.memref_slice %arg10[%c1_i32_166] : memref<2x!tpu.dma_semaphore, #tpu.memory_space<semaphore_mem>> -> memref<1x!tpu.dma_semaphore, #tpu.memory_space<semaphore_mem>>
      %409 = tpu.memref_squeeze %408 : memref<1x!tpu.dma_semaphore, #tpu.memory_space<semaphore_mem>> -> memref<!tpu.dma_semaphore, #tpu.memory_space<semaphore_mem>>
      tpu.wait_dma2 semaphore(%409 : memref<!tpu.dma_semaphore, #tpu.memory_space<semaphore_mem>>) src(%arg6 : memref<128x512xbf16, #tpu.memory_space<any>>) dst(%arg9 : memref<128x512xbf16, #tpu.memory_space<vmem>>)
    } else {
    }
    %c0 = arith.constant 0 : index
    %c0_1 = arith.constant 0 : index
    %c0_2 = arith.constant 0 : index
    %3 = vector.load %arg2[%c0, %c0_1, %c0_2] : memref<8x8x32xf32, #tpu.memory_space<vmem>>, vector<8x8x32xf32>
    %4 = vector.shape_cast %3 : vector<8x8x32xf32> to vector<64x32xf32>
    %5 = arith.truncf %4 : vector<64x32xf32> to vector<64x32xbf16>
    %c0_3 = arith.constant 0 : index
    %c0_4 = arith.constant 0 : index
    %6 = vector.load %arg8[%c0_3, %c0_4] : memref<32x512xbf16, #tpu.memory_space<vmem>>, vector<32x512xbf16>
    %cst = arith.constant dense<0.000000e+00> : vector<64x512xf32>
    %7 = tpu.matmul %5, %6, %cst {dimension_numbers = #tpu.dot_dimension_numbers<[1], [0], [0], [1], [0, 0, 1, 1], [], []>} : vector<64x32xbf16>, vector<32x512xbf16>, vector<64x512xf32> -> vector<64x512xf32>
    %c0_5 = arith.constant 0 : index
    %c0_6 = arith.constant 0 : index
    %8 = vector.load %arg4[%c0_5, %c0_6] : memref<1x512xf32, #tpu.memory_space<vmem>>, vector<1x512xf32>
    %9 = vector.broadcast %8 : vector<1x512xf32> to vector<64x512xf32>
    %10 = arith.addf %7, %9 : vector<64x512xf32>
    %c0_7 = arith.constant 0 : index
    %c0_8 = arith.constant 0 : index
    %11 = vector.load %arg13[%c0_7, %c0_8] : memref<64x512xf32, #tpu.memory_space<vmem>>, vector<64x512xf32>
    tpu.vector_store %arg13[%c0_7, %c0_8], %10 {strides = array<i32>} : memref<64x512xf32, #tpu.memory_space<vmem>>, vector<64x512xf32>,
    %c0_9 = arith.constant 0 : index
    %c0_10 = arith.constant 0 : index
    %12 = vector.load %arg3[%c0_9, %c0_10] : memref<8x1xi32, #tpu.memory_space<vmem>>, vector<8x1xi32>
    %c8_i32 = arith.constant 8 : i32
    %13 = arith.muli %arg1, %c8_i32 : i32
    %c0_i32_11 = arith.constant 0 : i32
    %c8_i32_12 = arith.constant 8 : i32
    %14 = arith.muli %c0_i32_11, %c8_i32_12 : i32
    %15 = tpu.assume_multiple %14, 8 : i32
    %16 = arith.index_cast %15 : i32 to index
    %c0_13 = arith.constant 0 : index
    %17 = vector.load %arg13[%16, %c0_13] : memref<64x512xf32, #tpu.memory_space<vmem>>, vector<8x512xf32>
    %c0_14 = arith.constant 0 : index
    %c0_15 = arith.constant 0 : index
    %18 = vector.load %arg11[%c0_14, %c0_15] : memref<8x128xf32, #tpu.memory_space<vmem>>, vector<8x128xf32>
    %19 = arith.truncf %18 : vector<8x128xf32> to vector<8x128xbf16>
    %c0_16 = arith.constant 0 : index
    %c0_17 = arith.constant 0 : index
    %20 = vector.load %arg9[%c0_16, %c0_17] : memref<128x512xbf16, #tpu.memory_space<vmem>>, vector<128x512xbf16>
    %cst_18 = arith.constant dense<0.000000e+00> : vector<8x512xf32>
    %21 = tpu.matmul %19, %20, %cst_18 {dimension_numbers = #tpu.dot_dimension_numbers<[1], [0], [0], [1], [0, 0, 1, 1], [], []>} : vector<8x128xbf16>, vector<128x512xbf16>, vector<8x512xf32> -> vector<8x512xf32>
    %22 = arith.addf %17, %21 : vector<8x512xf32>
    %23 = vector.extract_strided_slice %22 {offsets = [0, 0], sizes = [8, 128], strides = [1, 1]} : vector<8x512xf32> to vector<8x128xf32>
    %24 = arith.negf %23 : vector<8x128xf32>
    %25 = math.exp %24 : vector<8x128xf32>
    %cst_19 = arith.constant 1.000000e+00 : f32
    %26 = vector.broadcast %cst_19 : f32 to vector<8x128xf32>
    %27 = arith.addf %26, %25 : vector<8x128xf32>
    %28 = arith.divf %26, %27 : vector<8x128xf32>
    %29 = vector.extract_strided_slice %22 {offsets = [0, 128], sizes = [8, 128], strides = [1, 1]} : vector<8x512xf32> to vector<8x128xf32>
    %30 = arith.negf %29 : vector<8x128xf32>
    %31 = math.exp %30 : vector<8x128xf32>
    %cst_20 = arith.constant 1.000000e+00 : f32
    %32 = vector.broadcast %cst_20 : f32 to vector<8x128xf32>
    %33 = arith.addf %32, %31 : vector<8x128xf32>
    %34 = arith.divf %32, %33 : vector<8x128xf32>
    %35 = vector.extract_strided_slice %22 {offsets = [0, 256], sizes = [8, 128], strides = [1, 1]} : vector<8x512xf32> to vector<8x128xf32>
    %36 = math.tanh %35 : vector<8x128xf32>
    %37 = vector.extract_strided_slice %22 {offsets = [0, 384], sizes = [8, 128], strides = [1, 1]} : vector<8x512xf32> to vector<8x128xf32>
    %38 = arith.negf %37 : vector<8x128xf32>
    %39 = math.exp %38 : vector<8x128xf32>
    %cst_21 = arith.constant 1.000000e+00 : f32
    %40 = vector.broadcast %cst_21 : f32 to vector<8x128xf32>
    %41 = arith.addf %40, %39 : vector<8x128xf32>
    %42 = arith.divf %40, %41 : vector<8x128xf32>
    %c0_22 = arith.constant 0 : index
    %c0_23 = arith.constant 0 : index
    %43 = vector.load %arg12[%c0_22, %c0_23] : memref<8x128xf32, #tpu.memory_space<vmem>>, vector<8x128xf32>
    %44 = arith.mulf %34, %43 : vector<8x128xf32>
    %45 = arith.mulf %28, %36 : vector<8x128xf32>
    %46 = arith.addf %44, %45 : vector<8x128xf32>
    %47 = math.tanh %46 : vector<8x128xf32>
    %48 = arith.mulf %42, %47 : vector<8x128xf32>
    %c0_24 = arith.constant 0 : index
    %c0_25 = arith.constant 0 : index
    %49 = vector.load %arg12[%c0_24, %c0_25] : memref<8x128xf32, #tpu.memory_space<vmem>>, vector<8x128xf32>
    tpu.vector_store %arg12[%c0_24, %c0_25], %46 {strides = array<i32>} : memref<8x128xf32, #tpu.memory_space<vmem>>, vector<8x128xf32>,
    %c0_26 = arith.constant 0 : index
    %c0_27 = arith.constant 0 : index
    %50 = vector.load %arg11[%c0_26, %c0_27] : memref<8x128xf32, #tpu.memory_space<vmem>>, vector<8x128xf32>
    tpu.vector_store %arg11[%c0_26, %c0_27], %48 {strides = array<i32>} : memref<8x128xf32, #tpu.memory_space<vmem>>, vector<8x128xf32>,
    %51 = arith.addi %13, %c0_i32_11 : i32
    %52 = vector.broadcast %51 : i32 to vector<8x1xi32>
    %53 = arith.cmpi sgt, %12, %52 : vector<8x1xi32>
    %54 = arith.extui %53 : vector<8x1xi1> to vector<8x1xi32>
    %55 = arith.sitofp %54 : vector<8x1xi32> to vector<8x1xf32>
    %56 = vector.broadcast %55 : vector<8x1xf32> to vector<8x128xf32>
    %57 = arith.mulf %48, %56 : vector<8x128xf32>
    %58 = arith.index_cast %c0_i32_11 : i32 to index
    %c0_28 = arith.constant 0 : index
    %c0_29 = arith.constant 0 : index
    %59 = vector.load %arg7[%58, %c0_28, %c0_29] : memref<8x8x128xf32, #tpu.memory_space<vmem>>, vector<1x8x128xf32>
    %60 = vector.shape_cast %59 : vector<1x8x128xf32> to vector<8x128xf32>
    %61 = vector.shape_cast %57 : vector<8x128xf32> to vector<1x8x128xf32>
    tpu.vector_store %arg7[%58, %c0_28, %c0_29], %61 {strides = array<i32>} : memref<8x8x128xf32, #tpu.memory_space<vmem>>, vector<1x8x128xf32>,
    %c1_i32 = arith.constant 1 : i32
    %c8_i32_30 = arith.constant 8 : i32
    %62 = arith.muli %c1_i32, %c8_i32_30 : i32
    %63 = tpu.assume_multiple %62, 8 : i32
    %64 = arith.index_cast %63 : i32 to index
    %c0_31 = arith.constant 0 : index
    %65 = vector.load %arg13[%64, %c0_31] : memref<64x512xf32, #tpu.memory_space<vmem>>, vector<8x512xf32>
    %c0_32 = arith.constant 0 : index
    %c0_33 = arith.constant 0 : index
    %66 = vector.load %arg11[%c0_32, %c0_33] : memref<8x128xf32, #tpu.memory_space<vmem>>, vector<8x128xf32>
    %67 = arith.truncf %66 : vector<8x128xf32> to vector<8x128xbf16>
    %c0_34 = arith.constant 0 : index
    %c0_35 = arith.constant 0 : index
    %68 = vector.load %arg9[%c0_34, %c0_35] : memref<128x512xbf16, #tpu.memory_space<vmem>>, vector<128x512xbf16>
    %cst_36 = arith.constant dense<0.000000e+00> : vector<8x512xf32>
    %69 = tpu.matmul %67, %68, %cst_36 {dimension_numbers = #tpu.dot_dimension_numbers<[1], [0], [0], [1], [0, 0, 1, 1], [], []>} : vector<8x128xbf16>, vector<128x512xbf16>, vector<8x512xf32> -> vector<8x512xf32>
    %70 = arith.addf %65, %69 : vector<8x512xf32>
    %71 = vector.extract_strided_slice %70 {offsets = [0, 0], sizes = [8, 128], strides = [1, 1]} : vector<8x512xf32> to vector<8x128xf32>
    %72 = arith.negf %71 : vector<8x128xf32>
    %73 = math.exp %72 : vector<8x128xf32>
    %cst_37 = arith.constant 1.000000e+00 : f32
    %74 = vector.broadcast %cst_37 : f32 to vector<8x128xf32>
    %75 = arith.addf %74, %73 : vector<8x128xf32>
    %76 = arith.divf %74, %75 : vector<8x128xf32>
    %77 = vector.extract_strided_slice %70 {offsets = [0, 128], sizes = [8, 128], strides = [1, 1]} : vector<8x512xf32> to vector<8x128xf32>
    %78 = arith.negf %77 : vector<8x128xf32>
    %79 = math.exp %78 : vector<8x128xf32>
    %cst_38 = arith.constant 1.000000e+00 : f32
    %80 = vector.broadcast %cst_38 : f32 to vector<8x128xf32>
    %81 = arith.addf %80, %79 : vector<8x128xf32>
    %82 = arith.divf %80, %81 : vector<8x128xf32>
    %83 = vector.extract_strided_slice %70 {offsets = [0, 256], sizes = [8, 128], strides = [1, 1]} : vector<8x512xf32> to vector<8x128xf32>
    %84 = math.tanh %83 : vector<8x128xf32>
    %85 = vector.extract_strided_slice %70 {offsets = [0, 384], sizes = [8, 128], strides = [1, 1]} : vector<8x512xf32> to vector<8x128xf32>
    %86 = arith.negf %85 : vector<8x128xf32>
    %87 = math.exp %86 : vector<8x128xf32>
    %cst_39 = arith.constant 1.000000e+00 : f32
    %88 = vector.broadcast %cst_39 : f32 to vector<8x128xf32>
    %89 = arith.addf %88, %87 : vector<8x128xf32>
    %90 = arith.divf %88, %89 : vector<8x128xf32>
    %c0_40 = arith.constant 0 : index
    %c0_41 = arith.constant 0 : index
    %91 = vector.load %arg12[%c0_40, %c0_41] : memref<8x128xf32, #tpu.memory_space<vmem>>, vector<8x128xf32>
    %92 = arith.mulf %82, %91 : vector<8x128xf32>
    %93 = arith.mulf %76, %84 : vector<8x128xf32>
    %94 = arith.addf %92, %93 : vector<8x128xf32>
    %95 = math.tanh %94 : vector<8x128xf32>
    %96 = arith.mulf %90, %95 : vector<8x128xf32>
    %c0_42 = arith.constant 0 : index
    %c0_43 = arith.constant 0 : index
    %97 = vector.load %arg12[%c0_42, %c0_43] : memref<8x128xf32, #tpu.memory_space<vmem>>, vector<8x128xf32>
    tpu.vector_store %arg12[%c0_42, %c0_43], %94 {strides = array<i32>} : memref<8x128xf32, #tpu.memory_space<vmem>>, vector<8x128xf32>,
    %c0_44 = arith.constant 0 : index
    %c0_45 = arith.constant 0 : index
    %98 = vector.load %arg11[%c0_44, %c0_45] : memref<8x128xf32, #tpu.memory_space<vmem>>, vector<8x128xf32>
    tpu.vector_store %arg11[%c0_44, %c0_45], %96 {strides = array<i32>} : memref<8x128xf32, #tpu.memory_space<vmem>>, vector<8x128xf32>,
    %99 = arith.addi %13, %c1_i32 : i32
    %100 = vector.broadcast %99 : i32 to vector<8x1xi32>
    %101 = arith.cmpi sgt, %12, %100 : vector<8x1xi32>
    %102 = arith.extui %101 : vector<8x1xi1> to vector<8x1xi32>
    %103 = arith.sitofp %102 : vector<8x1xi32> to vector<8x1xf32>
    %104 = vector.broadcast %103 : vector<8x1xf32> to vector<8x128xf32>
    %105 = arith.mulf %96, %104 : vector<8x128xf32>
    %106 = arith.index_cast %c1_i32 : i32 to index
    %c0_46 = arith.constant 0 : index
    %c0_47 = arith.constant 0 : index
    %107 = vector.load %arg7[%106, %c0_46, %c0_47] : memref<8x8x128xf32, #tpu.memory_space<vmem>>, vector<1x8x128xf32>
    %108 = vector.shape_cast %107 : vector<1x8x128xf32> to vector<8x128xf32>
    %109 = vector.shape_cast %105 : vector<8x128xf32> to vector<1x8x128xf32>
    tpu.vector_store %arg7[%106, %c0_46, %c0_47], %109 {strides = array<i32>} : memref<8x8x128xf32, #tpu.memory_space<vmem>>, vector<1x8x128xf32>,
    %c2_i32 = arith.constant 2 : i32
    %c8_i32_48 = arith.constant 8 : i32
    %110 = arith.muli %c2_i32, %c8_i32_48 : i32
    %111 = tpu.assume_multiple %110, 8 : i32
    %112 = arith.index_cast %111 : i32 to index
    %c0_49 = arith.constant 0 : index
    %113 = vector.load %arg13[%112, %c0_49] : memref<64x512xf32, #tpu.memory_space<vmem>>, vector<8x512xf32>
    %c0_50 = arith.constant 0 : index
    %c0_51 = arith.constant 0 : index
    %114 = vector.load %arg11[%c0_50, %c0_51] : memref<8x128xf32, #tpu.memory_space<vmem>>, vector<8x128xf32>
    %115 = arith.truncf %114 : vector<8x128xf32> to vector<8x128xbf16>
    %c0_52 = arith.constant 0 : index
    %c0_53 = arith.constant 0 : index
    %116 = vector.load %arg9[%c0_52, %c0_53] : memref<128x512xbf16, #tpu.memory_space<vmem>>, vector<128x512xbf16>
    %cst_54 = arith.constant dense<0.000000e+00> : vector<8x512xf32>
    %117 = tpu.matmul %115, %116, %cst_54 {dimension_numbers = #tpu.dot_dimension_numbers<[1], [0], [0], [1], [0, 0, 1, 1], [], []>} : vector<8x128xbf16>, vector<128x512xbf16>, vector<8x512xf32> -> vector<8x512xf32>
    %118 = arith.addf %113, %117 : vector<8x512xf32>
    %119 = vector.extract_strided_slice %118 {offsets = [0, 0], sizes = [8, 128], strides = [1, 1]} : vector<8x512xf32> to vector<8x128xf32>
    %120 = arith.negf %119 : vector<8x128xf32>
    %121 = math.exp %120 : vector<8x128xf32>
    %cst_55 = arith.constant 1.000000e+00 : f32
    %122 = vector.broadcast %cst_55 : f32 to vector<8x128xf32>
    %123 = arith.addf %122, %121 : vector<8x128xf32>
    %124 = arith.divf %122, %123 : vector<8x128xf32>
    %125 = vector.extract_strided_slice %118 {offsets = [0, 128], sizes = [8, 128], strides = [1, 1]} : vector<8x512xf32> to vector<8x128xf32>
    %126 = arith.negf %125 : vector<8x128xf32>
    %127 = math.exp %126 : vector<8x128xf32>
    %cst_56 = arith.constant 1.000000e+00 : f32
    %128 = vector.broadcast %cst_56 : f32 to vector<8x128xf32>
    %129 = arith.addf %128, %127 : vector<8x128xf32>
    %130 = arith.divf %128, %129 : vector<8x128xf32>
    %131 = vector.extract_strided_slice %118 {offsets = [0, 256], sizes = [8, 128], strides = [1, 1]} : vector<8x512xf32> to vector<8x128xf32>
    %132 = math.tanh %131 : vector<8x128xf32>
    %133 = vector.extract_strided_slice %118 {offsets = [0, 384], sizes = [8, 128], strides = [1, 1]} : vector<8x512xf32> to vector<8x128xf32>
    %134 = arith.negf %133 : vector<8x128xf32>
    %135 = math.exp %134 : vector<8x128xf32>
    %cst_57 = arith.constant 1.000000e+00 : f32
    %136 = vector.broadcast %cst_57 : f32 to vector<8x128xf32>
    %137 = arith.addf %136, %135 : vector<8x128xf32>
    %138 = arith.divf %136, %137 : vector<8x128xf32>
    %c0_58 = arith.constant 0 : index
    %c0_59 = arith.constant 0 : index
    %139 = vector.load %arg12[%c0_58, %c0_59] : memref<8x128xf32, #tpu.memory_space<vmem>>, vector<8x128xf32>
    %140 = arith.mulf %130, %139 : vector<8x128xf32>
    %141 = arith.mulf %124, %132 : vector<8x128xf32>
    %142 = arith.addf %140, %141 : vector<8x128xf32>
    %143 = math.tanh %142 : vector<8x128xf32>
    %144 = arith.mulf %138, %143 : vector<8x128xf32>
    %c0_60 = arith.constant 0 : index
    %c0_61 = arith.constant 0 : index
    %145 = vector.load %arg12[%c0_60, %c0_61] : memref<8x128xf32, #tpu.memory_space<vmem>>, vector<8x128xf32>
    tpu.vector_store %arg12[%c0_60, %c0_61], %142 {strides = array<i32>} : memref<8x128xf32, #tpu.memory_space<vmem>>, vector<8x128xf32>,
    %c0_62 = arith.constant 0 : index
    %c0_63 = arith.constant 0 : index
    %146 = vector.load %arg11[%c0_62, %c0_63] : memref<8x128xf32, #tpu.memory_space<vmem>>, vector<8x128xf32>
    tpu.vector_store %arg11[%c0_62, %c0_63], %144 {strides = array<i32>} : memref<8x128xf32, #tpu.memory_space<vmem>>, vector<8x128xf32>,
    %147 = arith.addi %13, %c2_i32 : i32
    %148 = vector.broadcast %147 : i32 to vector<8x1xi32>
    %149 = arith.cmpi sgt, %12, %148 : vector<8x1xi32>
    %150 = arith.extui %149 : vector<8x1xi1> to vector<8x1xi32>
    %151 = arith.sitofp %150 : vector<8x1xi32> to vector<8x1xf32>
    %152 = vector.broadcast %151 : vector<8x1xf32> to vector<8x128xf32>
    %153 = arith.mulf %144, %152 : vector<8x128xf32>
    %154 = arith.index_cast %c2_i32 : i32 to index
    %c0_64 = arith.constant 0 : index
    %c0_65 = arith.constant 0 : index
    %155 = vector.load %arg7[%154, %c0_64, %c0_65] : memref<8x8x128xf32, #tpu.memory_space<vmem>>, vector<1x8x128xf32>
    %156 = vector.shape_cast %155 : vector<1x8x128xf32> to vector<8x128xf32>
    %157 = vector.shape_cast %153 : vector<8x128xf32> to vector<1x8x128xf32>
    tpu.vector_store %arg7[%154, %c0_64, %c0_65], %157 {strides = array<i32>} : memref<8x8x128xf32, #tpu.memory_space<vmem>>, vector<1x8x128xf32>,
    %c3_i32 = arith.constant 3 : i32
    %c8_i32_66 = arith.constant 8 : i32
    %158 = arith.muli %c3_i32, %c8_i32_66 : i32
    %159 = tpu.assume_multiple %158, 8 : i32
    %160 = arith.index_cast %159 : i32 to index
    %c0_67 = arith.constant 0 : index
    %161 = vector.load %arg13[%160, %c0_67] : memref<64x512xf32, #tpu.memory_space<vmem>>, vector<8x512xf32>
    %c0_68 = arith.constant 0 : index
    %c0_69 = arith.constant 0 : index
    %162 = vector.load %arg11[%c0_68, %c0_69] : memref<8x128xf32, #tpu.memory_space<vmem>>, vector<8x128xf32>
    %163 = arith.truncf %162 : vector<8x128xf32> to vector<8x128xbf16>
    %c0_70 = arith.constant 0 : index
    %c0_71 = arith.constant 0 : index
    %164 = vector.load %arg9[%c0_70, %c0_71] : memref<128x512xbf16, #tpu.memory_space<vmem>>, vector<128x512xbf16>
    %cst_72 = arith.constant dense<0.000000e+00> : vector<8x512xf32>
    %165 = tpu.matmul %163, %164, %cst_72 {dimension_numbers = #tpu.dot_dimension_numbers<[1], [0], [0], [1], [0, 0, 1, 1], [], []>} : vector<8x128xbf16>, vector<128x512xbf16>, vector<8x512xf32> -> vector<8x512xf32>
    %166 = arith.addf %161, %165 : vector<8x512xf32>
    %167 = vector.extract_strided_slice %166 {offsets = [0, 0], sizes = [8, 128], strides = [1, 1]} : vector<8x512xf32> to vector<8x128xf32>
    %168 = arith.negf %167 : vector<8x128xf32>
    %169 = math.exp %168 : vector<8x128xf32>
    %cst_73 = arith.constant 1.000000e+00 : f32
    %170 = vector.broadcast %cst_73 : f32 to vector<8x128xf32>
    %171 = arith.addf %170, %169 : vector<8x128xf32>
    %172 = arith.divf %170, %171 : vector<8x128xf32>
    %173 = vector.extract_strided_slice %166 {offsets = [0, 128], sizes = [8, 128], strides = [1, 1]} : vector<8x512xf32> to vector<8x128xf32>
    %174 = arith.negf %173 : vector<8x128xf32>
    %175 = math.exp %174 : vector<8x128xf32>
    %cst_74 = arith.constant 1.000000e+00 : f32
    %176 = vector.broadcast %cst_74 : f32 to vector<8x128xf32>
    %177 = arith.addf %176, %175 : vector<8x128xf32>
    %178 = arith.divf %176, %177 : vector<8x128xf32>
    %179 = vector.extract_strided_slice %166 {offsets = [0, 256], sizes = [8, 128], strides = [1, 1]} : vector<8x512xf32> to vector<8x128xf32>
    %180 = math.tanh %179 : vector<8x128xf32>
    %181 = vector.extract_strided_slice %166 {offsets = [0, 384], sizes = [8, 128], strides = [1, 1]} : vector<8x512xf32> to vector<8x128xf32>
    %182 = arith.negf %181 : vector<8x128xf32>
    %183 = math.exp %182 : vector<8x128xf32>
    %cst_75 = arith.constant 1.000000e+00 : f32
    %184 = vector.broadcast %cst_75 : f32 to vector<8x128xf32>
    %185 = arith.addf %184, %183 : vector<8x128xf32>
    %186 = arith.divf %184, %185 : vector<8x128xf32>
    %c0_76 = arith.constant 0 : index
    %c0_77 = arith.constant 0 : index
    %187 = vector.load %arg12[%c0_76, %c0_77] : memref<8x128xf32, #tpu.memory_space<vmem>>, vector<8x128xf32>
    %188 = arith.mulf %178, %187 : vector<8x128xf32>
    %189 = arith.mulf %172, %180 : vector<8x128xf32>
    %190 = arith.addf %188, %189 : vector<8x128xf32>
    %191 = math.tanh %190 : vector<8x128xf32>
    %192 = arith.mulf %186, %191 : vector<8x128xf32>
    %c0_78 = arith.constant 0 : index
    %c0_79 = arith.constant 0 : index
    %193 = vector.load %arg12[%c0_78, %c0_79] : memref<8x128xf32, #tpu.memory_space<vmem>>, vector<8x128xf32>
    tpu.vector_store %arg12[%c0_78, %c0_79], %190 {strides = array<i32>} : memref<8x128xf32, #tpu.memory_space<vmem>>, vector<8x128xf32>,
    %c0_80 = arith.constant 0 : index
    %c0_81 = arith.constant 0 : index
    %194 = vector.load %arg11[%c0_80, %c0_81] : memref<8x128xf32, #tpu.memory_space<vmem>>, vector<8x128xf32>
    tpu.vector_store %arg11[%c0_80, %c0_81], %192 {strides = array<i32>} : memref<8x128xf32, #tpu.memory_space<vmem>>, vector<8x128xf32>,
    %195 = arith.addi %13, %c3_i32 : i32
    %196 = vector.broadcast %195 : i32 to vector<8x1xi32>
    %197 = arith.cmpi sgt, %12, %196 : vector<8x1xi32>
    %198 = arith.extui %197 : vector<8x1xi1> to vector<8x1xi32>
    %199 = arith.sitofp %198 : vector<8x1xi32> to vector<8x1xf32>
    %200 = vector.broadcast %199 : vector<8x1xf32> to vector<8x128xf32>
    %201 = arith.mulf %192, %200 : vector<8x128xf32>
    %202 = arith.index_cast %c3_i32 : i32 to index
    %c0_82 = arith.constant 0 : index
    %c0_83 = arith.constant 0 : index
    %203 = vector.load %arg7[%202, %c0_82, %c0_83] : memref<8x8x128xf32, #tpu.memory_space<vmem>>, vector<1x8x128xf32>
    %204 = vector.shape_cast %203 : vector<1x8x128xf32> to vector<8x128xf32>
    %205 = vector.shape_cast %201 : vector<8x128xf32> to vector<1x8x128xf32>
    tpu.vector_store %arg7[%202, %c0_82, %c0_83], %205 {strides = array<i32>} : memref<8x8x128xf32, #tpu.memory_space<vmem>>, vector<1x8x128xf32>,
    %c4_i32 = arith.constant 4 : i32
    %c8_i32_84 = arith.constant 8 : i32
    %206 = arith.muli %c4_i32, %c8_i32_84 : i32
    %207 = tpu.assume_multiple %206, 8 : i32
    %208 = arith.index_cast %207 : i32 to index
    %c0_85 = arith.constant 0 : index
    %209 = vector.load %arg13[%208, %c0_85] : memref<64x512xf32, #tpu.memory_space<vmem>>, vector<8x512xf32>
    %c0_86 = arith.constant 0 : index
    %c0_87 = arith.constant 0 : index
    %210 = vector.load %arg11[%c0_86, %c0_87] : memref<8x128xf32, #tpu.memory_space<vmem>>, vector<8x128xf32>
    %211 = arith.truncf %210 : vector<8x128xf32> to vector<8x128xbf16>
    %c0_88 = arith.constant 0 : index
    %c0_89 = arith.constant 0 : index
    %212 = vector.load %arg9[%c0_88, %c0_89] : memref<128x512xbf16, #tpu.memory_space<vmem>>, vector<128x512xbf16>
    %cst_90 = arith.constant dense<0.000000e+00> : vector<8x512xf32>
    %213 = tpu.matmul %211, %212, %cst_90 {dimension_numbers = #tpu.dot_dimension_numbers<[1], [0], [0], [1], [0, 0, 1, 1], [], []>} : vector<8x128xbf16>, vector<128x512xbf16>, vector<8x512xf32> -> vector<8x512xf32>
    %214 = arith.addf %209, %213 : vector<8x512xf32>
    %215 = vector.extract_strided_slice %214 {offsets = [0, 0], sizes = [8, 128], strides = [1, 1]} : vector<8x512xf32> to vector<8x128xf32>
    %216 = arith.negf %215 : vector<8x128xf32>
    %217 = math.exp %216 : vector<8x128xf32>
    %cst_91 = arith.constant 1.000000e+00 : f32
    %218 = vector.broadcast %cst_91 : f32 to vector<8x128xf32>
    %219 = arith.addf %218, %217 : vector<8x128xf32>
    %220 = arith.divf %218, %219 : vector<8x128xf32>
    %221 = vector.extract_strided_slice %214 {offsets = [0, 128], sizes = [8, 128], strides = [1, 1]} : vector<8x512xf32> to vector<8x128xf32>
    %222 = arith.negf %221 : vector<8x128xf32>
    %223 = math.exp %222 : vector<8x128xf32>
    %cst_92 = arith.constant 1.000000e+00 : f32
    %224 = vector.broadcast %cst_92 : f32 to vector<8x128xf32>
    %225 = arith.addf %224, %223 : vector<8x128xf32>
    %226 = arith.divf %224, %225 : vector<8x128xf32>
    %227 = vector.extract_strided_slice %214 {offsets = [0, 256], sizes = [8, 128], strides = [1, 1]} : vector<8x512xf32> to vector<8x128xf32>
    %228 = math.tanh %227 : vector<8x128xf32>
    %229 = vector.extract_strided_slice %214 {offsets = [0, 384], sizes = [8, 128], strides = [1, 1]} : vector<8x512xf32> to vector<8x128xf32>
    %230 = arith.negf %229 : vector<8x128xf32>
    %231 = math.exp %230 : vector<8x128xf32>
    %cst_93 = arith.constant 1.000000e+00 : f32
    %232 = vector.broadcast %cst_93 : f32 to vector<8x128xf32>
    %233 = arith.addf %232, %231 : vector<8x128xf32>
    %234 = arith.divf %232, %233 : vector<8x128xf32>
    %c0_94 = arith.constant 0 : index
    %c0_95 = arith.constant 0 : index
    %235 = vector.load %arg12[%c0_94, %c0_95] : memref<8x128xf32, #tpu.memory_space<vmem>>, vector<8x128xf32>
    %236 = arith.mulf %226, %235 : vector<8x128xf32>
    %237 = arith.mulf %220, %228 : vector<8x128xf32>
    %238 = arith.addf %236, %237 : vector<8x128xf32>
    %239 = math.tanh %238 : vector<8x128xf32>
    %240 = arith.mulf %234, %239 : vector<8x128xf32>
    %c0_96 = arith.constant 0 : index
    %c0_97 = arith.constant 0 : index
    %241 = vector.load %arg12[%c0_96, %c0_97] : memref<8x128xf32, #tpu.memory_space<vmem>>, vector<8x128xf32>
    tpu.vector_store %arg12[%c0_96, %c0_97], %238 {strides = array<i32>} : memref<8x128xf32, #tpu.memory_space<vmem>>, vector<8x128xf32>,
    %c0_98 = arith.constant 0 : index
    %c0_99 = arith.constant 0 : index
    %242 = vector.load %arg11[%c0_98, %c0_99] : memref<8x128xf32, #tpu.memory_space<vmem>>, vector<8x128xf32>
    tpu.vector_store %arg11[%c0_98, %c0_99], %240 {strides = array<i32>} : memref<8x128xf32, #tpu.memory_space<vmem>>, vector<8x128xf32>,
    %243 = arith.addi %13, %c4_i32 : i32
    %244 = vector.broadcast %243 : i32 to vector<8x1xi32>
    %245 = arith.cmpi sgt, %12, %244 : vector<8x1xi32>
    %246 = arith.extui %245 : vector<8x1xi1> to vector<8x1xi32>
    %247 = arith.sitofp %246 : vector<8x1xi32> to vector<8x1xf32>
    %248 = vector.broadcast %247 : vector<8x1xf32> to vector<8x128xf32>
    %249 = arith.mulf %240, %248 : vector<8x128xf32>
    %250 = arith.index_cast %c4_i32 : i32 to index
    %c0_100 = arith.constant 0 : index
    %c0_101 = arith.constant 0 : index
    %251 = vector.load %arg7[%250, %c0_100, %c0_101] : memref<8x8x128xf32, #tpu.memory_space<vmem>>, vector<1x8x128xf32>
    %252 = vector.shape_cast %251 : vector<1x8x128xf32> to vector<8x128xf32>
    %253 = vector.shape_cast %249 : vector<8x128xf32> to vector<1x8x128xf32>
    tpu.vector_store %arg7[%250, %c0_100, %c0_101], %253 {strides = array<i32>} : memref<8x8x128xf32, #tpu.memory_space<vmem>>, vector<1x8x128xf32>,
    %c5_i32 = arith.constant 5 : i32
    %c8_i32_102 = arith.constant 8 : i32
    %254 = arith.muli %c5_i32, %c8_i32_102 : i32
    %255 = tpu.assume_multiple %254, 8 : i32
    %256 = arith.index_cast %255 : i32 to index
    %c0_103 = arith.constant 0 : index
    %257 = vector.load %arg13[%256, %c0_103] : memref<64x512xf32, #tpu.memory_space<vmem>>, vector<8x512xf32>
    %c0_104 = arith.constant 0 : index
    %c0_105 = arith.constant 0 : index
    %258 = vector.load %arg11[%c0_104, %c0_105] : memref<8x128xf32, #tpu.memory_space<vmem>>, vector<8x128xf32>
    %259 = arith.truncf %258 : vector<8x128xf32> to vector<8x128xbf16>
    %c0_106 = arith.constant 0 : index
    %c0_107 = arith.constant 0 : index
    %260 = vector.load %arg9[%c0_106, %c0_107] : memref<128x512xbf16, #tpu.memory_space<vmem>>, vector<128x512xbf16>
    %cst_108 = arith.constant dense<0.000000e+00> : vector<8x512xf32>
    %261 = tpu.matmul %259, %260, %cst_108 {dimension_numbers = #tpu.dot_dimension_numbers<[1], [0], [0], [1], [0, 0, 1, 1], [], []>} : vector<8x128xbf16>, vector<128x512xbf16>, vector<8x512xf32> -> vector<8x512xf32>
    %262 = arith.addf %257, %261 : vector<8x512xf32>
    %263 = vector.extract_strided_slice %262 {offsets = [0, 0], sizes = [8, 128], strides = [1, 1]} : vector<8x512xf32> to vector<8x128xf32>
    %264 = arith.negf %263 : vector<8x128xf32>
    %265 = math.exp %264 : vector<8x128xf32>
    %cst_109 = arith.constant 1.000000e+00 : f32
    %266 = vector.broadcast %cst_109 : f32 to vector<8x128xf32>
    %267 = arith.addf %266, %265 : vector<8x128xf32>
    %268 = arith.divf %266, %267 : vector<8x128xf32>
    %269 = vector.extract_strided_slice %262 {offsets = [0, 128], sizes = [8, 128], strides = [1, 1]} : vector<8x512xf32> to vector<8x128xf32>
    %270 = arith.negf %269 : vector<8x128xf32>
    %271 = math.exp %270 : vector<8x128xf32>
    %cst_110 = arith.constant 1.000000e+00 : f32
    %272 = vector.broadcast %cst_110 : f32 to vector<8x128xf32>
    %273 = arith.addf %272, %271 : vector<8x128xf32>
    %274 = arith.divf %272, %273 : vector<8x128xf32>
    %275 = vector.extract_strided_slice %262 {offsets = [0, 256], sizes = [8, 128], strides = [1, 1]} : vector<8x512xf32> to vector<8x128xf32>
    %276 = math.tanh %275 : vector<8x128xf32>
    %277 = vector.extract_strided_slice %262 {offsets = [0, 384], sizes = [8, 128], strides = [1, 1]} : vector<8x512xf32> to vector<8x128xf32>
    %278 = arith.negf %277 : vector<8x128xf32>
    %279 = math.exp %278 : vector<8x128xf32>
    %cst_111 = arith.constant 1.000000e+00 : f32
    %280 = vector.broadcast %cst_111 : f32 to vector<8x128xf32>
    %281 = arith.addf %280, %279 : vector<8x128xf32>
    %282 = arith.divf %280, %281 : vector<8x128xf32>
    %c0_112 = arith.constant 0 : index
    %c0_113 = arith.constant 0 : index
    %283 = vector.load %arg12[%c0_112, %c0_113] : memref<8x128xf32, #tpu.memory_space<vmem>>, vector<8x128xf32>
    %284 = arith.mulf %274, %283 : vector<8x128xf32>
    %285 = arith.mulf %268, %276 : vector<8x128xf32>
    %286 = arith.addf %284, %285 : vector<8x128xf32>
    %287 = math.tanh %286 : vector<8x128xf32>
    %288 = arith.mulf %282, %287 : vector<8x128xf32>
    %c0_114 = arith.constant 0 : index
    %c0_115 = arith.constant 0 : index
    %289 = vector.load %arg12[%c0_114, %c0_115] : memref<8x128xf32, #tpu.memory_space<vmem>>, vector<8x128xf32>
    tpu.vector_store %arg12[%c0_114, %c0_115], %286 {strides = array<i32>} : memref<8x128xf32, #tpu.memory_space<vmem>>, vector<8x128xf32>,
    %c0_116 = arith.constant 0 : index
    %c0_117 = arith.constant 0 : index
    %290 = vector.load %arg11[%c0_116, %c0_117] : memref<8x128xf32, #tpu.memory_space<vmem>>, vector<8x128xf32>
    tpu.vector_store %arg11[%c0_116, %c0_117], %288 {strides = array<i32>} : memref<8x128xf32, #tpu.memory_space<vmem>>, vector<8x128xf32>,
    %291 = arith.addi %13, %c5_i32 : i32
    %292 = vector.broadcast %291 : i32 to vector<8x1xi32>
    %293 = arith.cmpi sgt, %12, %292 : vector<8x1xi32>
    %294 = arith.extui %293 : vector<8x1xi1> to vector<8x1xi32>
    %295 = arith.sitofp %294 : vector<8x1xi32> to vector<8x1xf32>
    %296 = vector.broadcast %295 : vector<8x1xf32> to vector<8x128xf32>
    %297 = arith.mulf %288, %296 : vector<8x128xf32>
    %298 = arith.index_cast %c5_i32 : i32 to index
    %c0_118 = arith.constant 0 : index
    %c0_119 = arith.constant 0 : index
    %299 = vector.load %arg7[%298, %c0_118, %c0_119] : memref<8x8x128xf32, #tpu.memory_space<vmem>>, vector<1x8x128xf32>
    %300 = vector.shape_cast %299 : vector<1x8x128xf32> to vector<8x128xf32>
    %301 = vector.shape_cast %297 : vector<8x128xf32> to vector<1x8x128xf32>
    tpu.vector_store %arg7[%298, %c0_118, %c0_119], %301 {strides = array<i32>} : memref<8x8x128xf32, #tpu.memory_space<vmem>>, vector<1x8x128xf32>,
    %c6_i32 = arith.constant 6 : i32
    %c8_i32_120 = arith.constant 8 : i32
    %302 = arith.muli %c6_i32, %c8_i32_120 : i32
    %303 = tpu.assume_multiple %302, 8 : i32
    %304 = arith.index_cast %303 : i32 to index
    %c0_121 = arith.constant 0 : index
    %305 = vector.load %arg13[%304, %c0_121] : memref<64x512xf32, #tpu.memory_space<vmem>>, vector<8x512xf32>
    %c0_122 = arith.constant 0 : index
    %c0_123 = arith.constant 0 : index
    %306 = vector.load %arg11[%c0_122, %c0_123] : memref<8x128xf32, #tpu.memory_space<vmem>>, vector<8x128xf32>
    %307 = arith.truncf %306 : vector<8x128xf32> to vector<8x128xbf16>
    %c0_124 = arith.constant 0 : index
    %c0_125 = arith.constant 0 : index
    %308 = vector.load %arg9[%c0_124, %c0_125] : memref<128x512xbf16, #tpu.memory_space<vmem>>, vector<128x512xbf16>
    %cst_126 = arith.constant dense<0.000000e+00> : vector<8x512xf32>
    %309 = tpu.matmul %307, %308, %cst_126 {dimension_numbers = #tpu.dot_dimension_numbers<[1], [0], [0], [1], [0, 0, 1, 1], [], []>} : vector<8x128xbf16>, vector<128x512xbf16>, vector<8x512xf32> -> vector<8x512xf32>
    %310 = arith.addf %305, %309 : vector<8x512xf32>
    %311 = vector.extract_strided_slice %310 {offsets = [0, 0], sizes = [8, 128], strides = [1, 1]} : vector<8x512xf32> to vector<8x128xf32>
    %312 = arith.negf %311 : vector<8x128xf32>
    %313 = math.exp %312 : vector<8x128xf32>
    %cst_127 = arith.constant 1.000000e+00 : f32
    %314 = vector.broadcast %cst_127 : f32 to vector<8x128xf32>
    %315 = arith.addf %314, %313 : vector<8x128xf32>
    %316 = arith.divf %314, %315 : vector<8x128xf32>
    %317 = vector.extract_strided_slice %310 {offsets = [0, 128], sizes = [8, 128], strides = [1, 1]} : vector<8x512xf32> to vector<8x128xf32>
    %318 = arith.negf %317 : vector<8x128xf32>
    %319 = math.exp %318 : vector<8x128xf32>
    %cst_128 = arith.constant 1.000000e+00 : f32
    %320 = vector.broadcast %cst_128 : f32 to vector<8x128xf32>
    %321 = arith.addf %320, %319 : vector<8x128xf32>
    %322 = arith.divf %320, %321 : vector<8x128xf32>
    %323 = vector.extract_strided_slice %310 {offsets = [0, 256], sizes = [8, 128], strides = [1, 1]} : vector<8x512xf32> to vector<8x128xf32>
    %324 = math.tanh %323 : vector<8x128xf32>
    %325 = vector.extract_strided_slice %310 {offsets = [0, 384], sizes = [8, 128], strides = [1, 1]} : vector<8x512xf32> to vector<8x128xf32>
    %326 = arith.negf %325 : vector<8x128xf32>
    %327 = math.exp %326 : vector<8x128xf32>
    %cst_129 = arith.constant 1.000000e+00 : f32
    %328 = vector.broadcast %cst_129 : f32 to vector<8x128xf32>
    %329 = arith.addf %328, %327 : vector<8x128xf32>
    %330 = arith.divf %328, %329 : vector<8x128xf32>
    %c0_130 = arith.constant 0 : index
    %c0_131 = arith.constant 0 : index
    %331 = vector.load %arg12[%c0_130, %c0_131] : memref<8x128xf32, #tpu.memory_space<vmem>>, vector<8x128xf32>
    %332 = arith.mulf %322, %331 : vector<8x128xf32>
    %333 = arith.mulf %316, %324 : vector<8x128xf32>
    %334 = arith.addf %332, %333 : vector<8x128xf32>
    %335 = math.tanh %334 : vector<8x128xf32>
    %336 = arith.mulf %330, %335 : vector<8x128xf32>
    %c0_132 = arith.constant 0 : index
    %c0_133 = arith.constant 0 : index
    %337 = vector.load %arg12[%c0_132, %c0_133] : memref<8x128xf32, #tpu.memory_space<vmem>>, vector<8x128xf32>
    tpu.vector_store %arg12[%c0_132, %c0_133], %334 {strides = array<i32>} : memref<8x128xf32, #tpu.memory_space<vmem>>, vector<8x128xf32>,
    %c0_134 = arith.constant 0 : index
    %c0_135 = arith.constant 0 : index
    %338 = vector.load %arg11[%c0_134, %c0_135] : memref<8x128xf32, #tpu.memory_space<vmem>>, vector<8x128xf32>
    tpu.vector_store %arg11[%c0_134, %c0_135], %336 {strides = array<i32>} : memref<8x128xf32, #tpu.memory_space<vmem>>, vector<8x128xf32>,
    %339 = arith.addi %13, %c6_i32 : i32
    %340 = vector.broadcast %339 : i32 to vector<8x1xi32>
    %341 = arith.cmpi sgt, %12, %340 : vector<8x1xi32>
    %342 = arith.extui %341 : vector<8x1xi1> to vector<8x1xi32>
    %343 = arith.sitofp %342 : vector<8x1xi32> to vector<8x1xf32>
    %344 = vector.broadcast %343 : vector<8x1xf32> to vector<8x128xf32>
    %345 = arith.mulf %336, %344 : vector<8x128xf32>
    %346 = arith.index_cast %c6_i32 : i32 to index
    %c0_136 = arith.constant 0 : index
    %c0_137 = arith.constant 0 : index
    %347 = vector.load %arg7[%346, %c0_136, %c0_137] : memref<8x8x128xf32, #tpu.memory_space<vmem>>, vector<1x8x128xf32>
    %348 = vector.shape_cast %347 : vector<1x8x128xf32> to vector<8x128xf32>
    %349 = vector.shape_cast %345 : vector<8x128xf32> to vector<1x8x128xf32>
    tpu.vector_store %arg7[%346, %c0_136, %c0_137], %349 {strides = array<i32>} : memref<8x8x128xf32, #tpu.memory_space<vmem>>, vector<1x8x128xf32>,
    %c7_i32 = arith.constant 7 : i32
    %c8_i32_138 = arith.constant 8 : i32
    %350 = arith.muli %c7_i32, %c8_i32_138 : i32
    %351 = tpu.assume_multiple %350, 8 : i32
    %352 = arith.index_cast %351 : i32 to index
    %c0_139 = arith.constant 0 : index
    %353 = vector.load %arg13[%352, %c0_139] : memref<64x512xf32, #tpu.memory_space<vmem>>, vector<8x512xf32>
    %c0_140 = arith.constant 0 : index
    %c0_141 = arith.constant 0 : index
    %354 = vector.load %arg11[%c0_140, %c0_141] : memref<8x128xf32, #tpu.memory_space<vmem>>, vector<8x128xf32>
    %355 = arith.truncf %354 : vector<8x128xf32> to vector<8x128xbf16>
    %c0_142 = arith.constant 0 : index
    %c0_143 = arith.constant 0 : index
    %356 = vector.load %arg9[%c0_142, %c0_143] : memref<128x512xbf16, #tpu.memory_space<vmem>>, vector<128x512xbf16>
    %cst_144 = arith.constant dense<0.000000e+00> : vector<8x512xf32>
    %357 = tpu.matmul %355, %356, %cst_144 {dimension_numbers = #tpu.dot_dimension_numbers<[1], [0], [0], [1], [0, 0, 1, 1], [], []>} : vector<8x128xbf16>, vector<128x512xbf16>, vector<8x512xf32> -> vector<8x512xf32>
    %358 = arith.addf %353, %357 : vector<8x512xf32>
    %359 = vector.extract_strided_slice %358 {offsets = [0, 0], sizes = [8, 128], strides = [1, 1]} : vector<8x512xf32> to vector<8x128xf32>
    %360 = arith.negf %359 : vector<8x128xf32>
    %361 = math.exp %360 : vector<8x128xf32>
    %cst_145 = arith.constant 1.000000e+00 : f32
    %362 = vector.broadcast %cst_145 : f32 to vector<8x128xf32>
    %363 = arith.addf %362, %361 : vector<8x128xf32>
    %364 = arith.divf %362, %363 : vector<8x128xf32>
    %365 = vector.extract_strided_slice %358 {offsets = [0, 128], sizes = [8, 128], strides = [1, 1]} : vector<8x512xf32> to vector<8x128xf32>
    %366 = arith.negf %365 : vector<8x128xf32>
    %367 = math.exp %366 : vector<8x128xf32>
    %cst_146 = arith.constant 1.000000e+00 : f32
    %368 = vector.broadcast %cst_146 : f32 to vector<8x128xf32>
    %369 = arith.addf %368, %367 : vector<8x128xf32>
    %370 = arith.divf %368, %369 : vector<8x128xf32>
    %371 = vector.extract_strided_slice %358 {offsets = [0, 256], sizes = [8, 128], strides = [1, 1]} : vector<8x512xf32> to vector<8x128xf32>
    %372 = math.tanh %371 : vector<8x128xf32>
    %373 = vector.extract_strided_slice %358 {offsets = [0, 384], sizes = [8, 128], strides = [1, 1]} : vector<8x512xf32> to vector<8x128xf32>
    %374 = arith.negf %373 : vector<8x128xf32>
    %375 = math.exp %374 : vector<8x128xf32>
    %cst_147 = arith.constant 1.000000e+00 : f32
    %376 = vector.broadcast %cst_147 : f32 to vector<8x128xf32>
    %377 = arith.addf %376, %375 : vector<8x128xf32>
    %378 = arith.divf %376, %377 : vector<8x128xf32>
    %c0_148 = arith.constant 0 : index
    %c0_149 = arith.constant 0 : index
    %379 = vector.load %arg12[%c0_148, %c0_149] : memref<8x128xf32, #tpu.memory_space<vmem>>, vector<8x128xf32>
    %380 = arith.mulf %370, %379 : vector<8x128xf32>
    %381 = arith.mulf %364, %372 : vector<8x128xf32>
    %382 = arith.addf %380, %381 : vector<8x128xf32>
    %383 = math.tanh %382 : vector<8x128xf32>
    %384 = arith.mulf %378, %383 : vector<8x128xf32>
    %c0_150 = arith.constant 0 : index
    %c0_151 = arith.constant 0 : index
    %385 = vector.load %arg12[%c0_150, %c0_151] : memref<8x128xf32, #tpu.memory_space<vmem>>, vector<8x128xf32>
    tpu.vector_store %arg12[%c0_150, %c0_151], %382 {strides = array<i32>} : memref<8x128xf32, #tpu.memory_space<vmem>>, vector<8x128xf32>,
    %c0_152 = arith.constant 0 : index
    %c0_153 = arith.constant 0 : index
    %386 = vector.load %arg11[%c0_152, %c0_153] : memref<8x128xf32, #tpu.memory_space<vmem>>, vector<8x128xf32>
    tpu.vector_store %arg11[%c0_152, %c0_153], %384 {strides = array<i32>} : memref<8x128xf32, #tpu.memory_space<vmem>>, vector<8x128xf32>,
    %387 = arith.addi %13, %c7_i32 : i32
    %388 = vector.broadcast %387 : i32 to vector<8x1xi32>
    %389 = arith.cmpi sgt, %12, %388 : vector<8x1xi32>
    %390 = arith.extui %389 : vector<8x1xi1> to vector<8x1xi32>
    %391 = arith.sitofp %390 : vector<8x1xi32> to vector<8x1xf32>
    %392 = vector.broadcast %391 : vector<8x1xf32> to vector<8x128xf32>
    %393 = arith.mulf %384, %392 : vector<8x128xf32>
    %394 = arith.index_cast %c7_i32 : i32 to index
    %c0_154 = arith.constant 0 : index
    %c0_155 = arith.constant 0 : index
    %395 = vector.load %arg7[%394, %c0_154, %c0_155] : memref<8x8x128xf32, #tpu.memory_space<vmem>>, vector<1x8x128xf32>
    %396 = vector.shape_cast %395 : vector<1x8x128xf32> to vector<8x128xf32>
    %397 = vector.shape_cast %393 : vector<8x128xf32> to vector<1x8x128xf32>
    tpu.vector_store %arg7[%394, %c0_154, %c0_155], %397 {strides = array<i32>} : memref<8x8x128xf32, #tpu.memory_space<vmem>>, vector<1x8x128xf32>,
    %c8_i32_156 = arith.constant 8 : i32
    return
  }
  func.func @transform_0(%arg0: i32, %arg1: i32) -> (i32, i32, i32) {
    %c0_i32 = arith.constant 0 : i32
    %c0_i32_0 = arith.constant 0 : i32
    return %arg1, %arg0, %c0_i32 : i32, i32, i32
  }
  func.func @transform_1(%arg0: i32, %arg1: i32) -> (i32, i32) {
    %c0_i32 = arith.constant 0 : i32
    %c0_i32_0 = arith.constant 0 : i32
    return %arg0, %c0_i32 : i32, i32
  }
  func.func @transform_2(%arg0: i32, %arg1: i32) -> (i32, i32) {
    %c0_i32 = arith.constant 0 : i32
    %c0_i32_0 = arith.constant 0 : i32
    %c0_i32_1 = arith.constant 0 : i32
    return %c0_i32, %c0_i32_0 : i32, i32
  }
  func.func @transform_5(%arg0: i32, %arg1: i32) -> (i32, i32, i32) {
    %c0_i32 = arith.constant 0 : i32
    %c0_i32_0 = arith.constant 0 : i32
    return %arg1, %arg0, %c0_i32 : i32, i32, i32
  }
}

</mosaic_0001>

<llo_original>
// kernel: tpu_custom_call.1
$region0: #{tpu_custom_call.1}
  #allocation0 [shape = 'u32[]', space=smem, size = 0x4, offset = 0x4, fixed_abs, tag = 'smem constant byte address 0x4 - core index']
  #allocation1 [shape = 'u32[144,128]{1,0:T(1,128)}', space=vmem, size = 0x12000, scoped, tag = 'internal scratch']
  #allocation2 [shape = 'bf16[32,512]{1,0:T(16,128)(2,1)}', space=vmem, size = 0x8000, scoped, tag = 'scratch operand']
  #allocation3 [shape = 'bf16[128,512]{1,0:T(16,128)(2,1)}', space=vmem, size = 0x20000, scoped, tag = 'scratch operand']
  #allocation4 [shape = 's32[2]{0}', space=sflag, size = 0x8, scoped, tag = 'scratch operand']
  #allocation5 [shape = 'f32[8,128]{1,0:T(8,128)}', space=vmem, size = 0x1000, scoped, tag = 'scratch operand']
  #allocation6 [shape = 'f32[8,128]{1,0:T(8,128)}', space=vmem, size = 0x1000, scoped, tag = 'scratch operand']
  #allocation7 [shape = 'f32[64,512]{1,0:T(8,128)}', space=vmem, size = 0x20000, scoped, tag = 'scratch operand']
  #allocation12 [shape = 's32[]', space=sflag, size = 0x4, offset = 0, fixed_abs, tag = 'sflag constant byte address 0x0 - dummy sync flag']
  #allocation14 [shape = 's32[]', space=sflag, size = 0x4, offset = 0, fixed_abs, tag = 'sflag constant byte address 0x0 - dummy sync flag']
  %s0 = inlined_call_operand.hbm [shape: f32[16,8,32], index: 0, kind: input, shape index: {}]
  %s1 = inlined_call_operand.vmem [shape: s32[8,1], index: 1, kind: input, shape index: {}]
  %s2 = inlined_call_operand.vmem [shape: f32[1,512], index: 2, kind: input, shape index: {}]
  %s3 = inlined_call_operand.hbm [shape: bf16[32,512], index: 3, kind: input, shape index: {}]
  %s4 = inlined_call_operand.hbm [shape: bf16[128,512], index: 4, kind: input, shape index: {}]
  %s5 = inlined_call_operand.hbm [shape: f32[16,8,128], index: 5, kind: output, shape index: {}]
  %s6 = sld [smem:[#allocation0]]
  $region53: #{tpu_custom_call.1} parent=0
    _
  %s8 = ssub.s32 1, %s6
  %s9 = scalar_select 0, %s8, %s6
  $region1: #{tpu_custom_call.1} parent=0
    #allocation8 [shape = 'u8[65536]{0}', space=vmem, size = 0x10000, scoped, tag = 'input window, operand 0']
    #allocation9 [shape = 's32[2]{0}', space=sflag, size = 0x8, scoped, tag = 'scoped memory for tpu_custom_call.1']
    #allocation10 [shape = 's32[2]{0}', space=sflag, size = 0x8, scoped, tag = 'scoped memory for tpu_custom_call.1']
    #allocation11 [shape = 'u8[65536]{0}', space=vmem, size = 0x10000, scoped, tag = 'output window, operand 0']
    %10 = vsyncpa [#allocation9], 0
    %s11 = scalar_lea.sflag [#allocation9], 1
    %12 = vsyncpa %s11, 0
    %13 = vsyncpa [#allocation10], 0
    %s14 = scalar_lea.sflag [#allocation10], 1
    %15 = vsyncpa %s14, 0
    loop: start=0, step=1, limit=4
    $region2: #{tpu_custom_call.1} parent=1 // loop_pre_header
      _
    $region3: #{tpu_custom_call.1} parent=1 // loop_header
      %s17 = sphi 0, %s21
      %p18 = scmp.ge.s32.totalorder %s17, 4
      %s24 = sphi 0, %s36
      %s25 = sphi 0, %s32
      %s26 = sphi 0, %s24
      %s27 = sphi 0, %s25
      %s28 = sphi 0, %s26
      %s29 = sphi 0, %s27
      %s41 = sphi 0, %s43
      %s44 = sphi 0, %s41
      %s45 = sphi 0, %s44
      %s61 = sphi 0, %s45
      %s67 = sphi 0, %s69
      %s70 = sphi 0, %s67
      %s71 = sphi 0, %s70
      %s87 = sphi 0, %s71
      %s91 = sphi 0, %s91
      %s93 = sphi 0, %s91
      %s94 = sphi 0, %s93
      %s108 = sphi 0, %s94
      %s116 = sphi 0, %s118
      %s119 = sphi 0, %s116
      %s120 = sphi 0, %s119
      %s136 = sphi 0, %s120
    $region4: #{tpu_custom_call.1} parent=1 // loop_header_branch
      %20 = sbr.rel (%p18) target = $region8
    $region5: #{tpu_custom_call.1} parent=1 // loop_body
      %s22 = ssub.s32 %s17, 1
      %s23 = ssub.s32 %s17, 2
      %s30 = sadd.s32 1, %s25
      %p31 = scmp.ge.s32.totalorder %s30, 2
      %s32 = scalar_select %p31, 0, %s30
      %s33 = sadd.s32 1, %s24
      %s34 = scalar_select %p31, %s33, %s24
      %p35 = scmp.ge.s32.totalorder %s34, 1
      %s36 = scalar_select %p35, 0, %s34
      %s37 = ssub.s32 %s25, %s32
      %s38 = ssub.s32 %s24, %s36
      %s39 = sor.u32 %s37, %s38
      %p40 = scmp.eq.s32.totalorder %s39, 0
      %s42 = sadd.s32 %s41, 1
      %s43 = scalar_select %p40, %s41, %s42
      %p46 = pneg %p40
      %p47 = scmp.eq.s32.totalorder %s17, 1
      %p48 = por %p46, %p47
      %p49 = scmp.ne.s32.totalorder %s41, %s44
      %p50 = scmp.eq.s32.totalorder %s17, 0
      %p51 = por %p49, %p50
      %p52 = scmp.ne.s32.totalorder %s41, %s44
      %p53 = scmp.eq.s32.totalorder %s22, 1
      %p54 = por %p52, %p53
      %p55 = scmp.ne.s32.totalorder %s44, %s45
      %p56 = scmp.eq.s32.totalorder %s22, 0
      %p57 = por %p55, %p56
      %p58 = scmp.ne.s32.totalorder %s44, %s45
      %p59 = scmp.eq.s32.totalorder %s23, 1
      %p60 = por %p58, %p59
      %p62 = scmp.ne.s32.totalorder %s45, %s61
      %p63 = scmp.eq.s32.totalorder %s23, 0
      %p64 = por %p62, %p63
      %s65 = ssub.s32 %s24, %s36
      %p66 = scmp.eq.s32.totalorder %s65, 0
      %s68 = sadd.s32 %s67, 1
      %s69 = scalar_select %p66, %s67, %s68
      %p72 = pneg %p66
      %p73 = scmp.eq.s32.totalorder %s17, 1
      %p74 = por %p72, %p73
      %p75 = scmp.ne.s32.totalorder %s67, %s70
      %p76 = scmp.eq.s32.totalorder %s17, 0
      %p77 = por %p75, %p76
      %p78 = scmp.ne.s32.totalorder %s67, %s70
      %p79 = scmp.eq.s32.totalorder %s22, 1
      %p80 = por %p78, %p79
      %p81 = scmp.ne.s32.totalorder %s70, %s71
      %p82 = scmp.eq.s32.totalorder %s22, 0
      %p83 = por %p81, %p82
      %p84 = scmp.ne.s32.totalorder %s70, %s71
      %p85 = scmp.eq.s32.totalorder %s23, 1
      %p86 = por %p84, %p85
      %p88 = scmp.ne.s32.totalorder %s71, %s87
      %p89 = scmp.eq.s32.totalorder %s23, 0
      %p90 = por %p88, %p89
      %s92 = sadd.s32 %s91, 1
      %p95 = scmp.eq.s32.totalorder %s17, 1
      %p96 = scmp.ne.s32.totalorder %s91, %s93
      %p97 = scmp.eq.s32.totalorder %s17, 0
      %p98 = por %p96, %p97
      %p99 = scmp.ne.s32.totalorder %s91, %s93
      %p100 = scmp.eq.s32.totalorder %s22, 1
      %p101 = por %p99, %p100
      %p102 = scmp.ne.s32.totalorder %s93, %s94
      %p103 = scmp.eq.s32.totalorder %s22, 0
      %p104 = por %p102, %p103
      %p105 = scmp.ne.s32.totalorder %s93, %s94
      %p106 = scmp.eq.s32.totalorder %s23, 1
      %p107 = por %p105, %p106
      %p109 = scmp.ne.s32.totalorder %s94, %s108
      %p110 = scmp.eq.s32.totalorder %s23, 0
      %p111 = por %p109, %p110
      %s112 = ssub.s32 %s25, %s32
      %s113 = ssub.s32 %s24, %s36
      %s114 = sor.u32 %s112, %s113
      %p115 = scmp.eq.s32.totalorder %s114, 0
      %s117 = sadd.s32 %s116, 1
      %s118 = scalar_select %p115, %s116, %s117
      %p121 = pneg %p115
      %p122 = scmp.eq.s32.totalorder %s17, 1
      %p123 = por %p121, %p122
      %p124 = scmp.ne.s32.totalorder %s116, %s119
      %p125 = scmp.eq.s32.totalorder %s17, 0
      %p126 = por %p124, %p125
      %p127 = scmp.ne.s32.totalorder %s116, %s119
      %p128 = scmp.eq.s32.totalorder %s22, 1
      %p129 = por %p127, %p128
      %p130 = scmp.ne.s32.totalorder %s119, %s120
      %p131 = scmp.eq.s32.totalorder %s22, 0
      %p132 = por %p130, %p131
      %p133 = scmp.ne.s32.totalorder %s119, %s120
      %p134 = scmp.eq.s32.totalorder %s23, 1
      %p135 = por %p133, %p134
      %p137 = scmp.ne.s32.totalorder %s120, %s136
      %p138 = scmp.eq.s32.totalorder %s23, 0
      %p139 = por %p137, %p138
      %p140 = scmp.le.s32.totalorder 1, %s17
      %p141 = scmp.lt.s32.totalorder %s17, 3
      %p142 = pnand %p140, %p141
      %p143 = pneg %p142
      // Predicated region
      $region9: #{tpu_custom_call.1} parent=5 // pred_check
        _
      $region10: #{tpu_custom_call.1} parent=5 // pred_check_branch
        %145 = sbr.rel (%p142) target = $region12
      $region11: #{tpu_custom_call.1} parent=5 // pred_region
        %s146 = ssub.s32 %s17, 1
        // Predicated region
        $region13: #{tpu_custom_call.1} parent=11 // pred_check
          %p147 = pneg %p83
        $region14: #{tpu_custom_call.1} parent=11 // pred_check_branch
          %149 = sbr.rel (%p147) target = $region16
        $region15: #{tpu_custom_call.1} parent=11 // pred_region
          %p150 = scmp.lt.s32.totalorder %s26, 0
          %s151 = scalar_select %p150, %s26, 0
          %s152 = smul.addr %s151, 8
          %s153 = scalar_lea.vmem %s1, %s152
        $region16: #{tpu_custom_call.1} parent=11 // pred_fallthru
          _
        // Predicated region
        $region17: #{tpu_custom_call.1} parent=11 // pred_check
          %p154 = pneg %p104
        $region18: #{tpu_custom_call.1} parent=11 // pred_check_branch
          %156 = sbr.rel (%p154) target = $region20
        $region19: #{tpu_custom_call.1} parent=11 // pred_region
          _
        $region20: #{tpu_custom_call.1} parent=11 // pred_fallthru
          _
      $region12: #{tpu_custom_call.1} parent=5 // pred_fallthru
        _
      %p157 = scmp.lt.s32.totalorder %s17, 2
      // Predicated region
      $region21: #{tpu_custom_call.1} parent=5 // pred_check
        %p158 = pneg %p157
      $region22: #{tpu_custom_call.1} parent=5 // pred_check_branch
        %160 = sbr.rel (%p158) target = $region24
      $region23: #{tpu_custom_call.1} parent=5 // pred_region
        // Predicated region
        $region25: #{tpu_custom_call.1} parent=23 // pred_check
          %p161 = pneg %p51
        $region26: #{tpu_custom_call.1} parent=23 // pred_check_branch
          %163 = sbr.rel (%p161) target = $region28
        $region27: #{tpu_custom_call.1} parent=23 // pred_region
          %s164 = sand.u32 %s41, 1
          %s165 = scalar_lea.sflag [#allocation9], %s164
          %s166 = sand.u32 %s41, 1
          %s167 = smul.addr %s166, 64
          %s168 = scalar_lea.vmem [#allocation8], %s167
          %s169 = smul.u32 8, %s25
          %s171 = ssub.s32 1024, 1024
          %172 = vsyncadd %s165, %s171
          %s173 = sadd.s32 %s24, %s169
          %s174 = smul.addr %s173, 128
          %s175 = scalar_lea.hbm %s0, %s174
          %s176 = sshll.u32 %s168, 4
          %s177 = int_to_ptr.vmem [resolvable:$true] %s176
          %182 = dma.hbm_to_vmem [thread:$0]  %s175, 1024, %s177, %s165, 128, 128, 8
        $region28: #{tpu_custom_call.1} parent=23 // pred_fallthru
          _
      $region24: #{tpu_custom_call.1} parent=5 // pred_fallthru
        _
      %p183 = scmp.le.s32.totalorder 1, %s17
      %p184 = scmp.lt.s32.totalorder %s17, 3
      %p185 = pnand %p183, %p184
      %p186 = pneg %p185
      // Predicated region
      $region29: #{tpu_custom_call.1} parent=5 // pred_check
        _
      $region30: #{tpu_custom_call.1} parent=5 // pred_check_branch
        %188 = sbr.rel (%p185) target = $region32
      $region31: #{tpu_custom_call.1} parent=5 // pred_region
        %s189 = ssub.s32 %s17, 1
        %s190 = sand.u32 %s44, 1
        %s191 = scalar_lea.sflag [#allocation9], %s190
        %s192 = sand.u32 %s44, 1
        %s193 = smul.addr %s192, 64
        %s194 = scalar_lea.vmem [#allocation8], %s193
        // Predicated region
        $region33: #{tpu_custom_call.1} parent=31 // pred_check
          %p195 = pneg %p57
        $region34: #{tpu_custom_call.1} parent=31 // pred_check_branch
          %197 = sbr.rel (%p195) target = $region36
        $region35: #{tpu_custom_call.1} parent=31 // pred_region
          %198 = dma.done %s191, 1024
        $region36: #{tpu_custom_call.1} parent=31 // pred_fallthru
          _
        %s199 = sand.u32 %s44, 1
        %s200 = scalar_lea.sflag [#allocation9], %s199
        %s201 = sand.u32 %s44, 1
        %s202 = smul.addr %s201, 64
        %s203 = scalar_lea.vmem [#allocation8], %s202
        %p204 = pneg %p57
        %p205 = pneg %p54
        %p206 = scmp.lt.s32.totalorder %s26, 0
        %s207 = scalar_select %p206, %s26, 0
        %s208 = smul.addr %s207, 8
        %s209 = scalar_lea.vmem %s1, %s208
        %p210 = pneg %p83
        %p211 = pneg %p80
        %p212 = pneg %p104
        %p213 = pneg %p101
        %p214 = pneg %p132
        %p215 = pneg %p129
        %s216 = sand.u32 %s119, 1
        %s217 = scalar_lea.sflag [#allocation10], %s216
        %s218 = sand.u32 %s119, 1
        %s219 = smul.addr %s218, 64
        %s220 = scalar_lea.vmem [#allocation11], %s219
        %s221 = smul.u32 8, %s27
        %p222 = scmp.lt.s32.totalorder %s26, 0
        %s223 = scalar_select %p222, %s26, 0
        %s224 = smul.addr %s223, 8
        %s225 = scalar_lea.vmem %s1, %s224
        %s226 = smul.u32 8, %s27
        %p228 = scmp.eq.s32.totalorder %s27, 0
        // Predicated region
        $region37: #{tpu_custom_call.1} parent=31 // pred_check
          %p229 = pneg %p228
        $region38: #{tpu_custom_call.1} parent=31 // pred_check_branch
          %231 = sbr.rel (%p229) target = $region40
        $region39: #{tpu_custom_call.1} parent=31 // pred_region
          #allocation13 [shape = 'u32[9]{0}', space=smem, size = 0x24, scoped, tag = 'DMA stride descriptor']
          #allocation15 [shape = 'u32[9]{0}', space=smem, size = 0x24, scoped, tag = 'DMA stride descriptor']
          %s233 = sshll.u32 1, 14
          %s234 = sxor.u32 4294967295, %s233
          %s236 = sld [smem:[#allocation0]]
          %s237 = sadd.s32 2, %s236
          %s239 = sshll.u32 7, 26
          %s240 = sxor.u32 4294967295, %s239
          %s241 = sand.u32 0, %s240
          %s242 = sshll.u32 %s237, 26
          %s243 = sor.u32 %s241, %s242
          %s244 = sshll.u32 [#allocation2], 4
          %s245 = int_to_ptr.vmem [resolvable:$true] %s244
          %248 = sst [smem:[#allocation13]] 512
          %s249 = scalar_lea.smem [#allocation13], 1
          %250 = sst [smem:[%s249]] 512
          %s251 = scalar_lea.smem [#allocation13], 2
          %252 = sst [smem:[%s251]] 4
          %s253 = scalar_lea.smem [#allocation13], 3
          %254 = sst [smem:[%s253]] 64
          %s255 = scalar_lea.smem [#allocation13], 4
          %256 = sst [smem:[%s255]] 128
          %s257 = scalar_lea.smem [#allocation13], 5
          %258 = sst [smem:[%s257]] 2
          %s259 = scalar_lea.smem [#allocation13], 6
          %260 = sst [smem:[%s259]] 256
          %s261 = scalar_lea.smem [#allocation13], 7
          %262 = sst [smem:[%s261]] 64
          %s263 = scalar_lea.smem [#allocation13], 8
          %264 = sst [smem:[%s263]] 4
          %266 = dma.general %s3, 1024, %s245, [#allocation4], [#allocation12], [#allocation13], %s243, 0
          %s267 = scalar_lea.sflag [#allocation4], 1
          %s269 = sshll.u32 1, 14
          %s270 = sxor.u32 4294967295, %s269
          %s272 = sadd.s32 2, %s236
          %s274 = sshll.u32 7, 26
          %s275 = sxor.u32 4294967295, %s274
          %s276 = sand.u32 0, %s275
          %s277 = sshll.u32 %s272, 26
          %s278 = sor.u32 %s276, %s277
          %s279 = sshll.u32 [#allocation3], 4
          %s280 = int_to_ptr.vmem [resolvable:$true] %s279
          %283 = sst [smem:[#allocation15]] 512
          %s284 = scalar_lea.smem [#allocation15], 1
          %285 = sst [smem:[%s284]] 512
          %s286 = scalar_lea.smem [#allocation15], 2
          %287 = sst [smem:[%s286]] 4
          %s288 = scalar_lea.smem [#allocation15], 3
          %289 = sst [smem:[%s288]] 64
          %s290 = scalar_lea.smem [#allocation15], 4
          %291 = sst [smem:[%s290]] 128
          %s292 = scalar_lea.smem [#allocation15], 5
          %293 = sst [smem:[%s292]] 2
          %s294 = scalar_lea.smem [#allocation15], 6
          %295 = sst [smem:[%s294]] 256
          %s296 = scalar_lea.smem [#allocation15], 7
          %297 = sst [smem:[%s296]] 64
          %s298 = scalar_lea.smem [#allocation15], 8
          %299 = sst [smem:[%s298]] 4
          %301 = dma.general %s4, 4096, %s280, %s267, [#allocation14], [#allocation15], %s278, 0
          %302 = vst [vmem:[#allocation5] sm:$0xff] 0.0
          %303 = vst [vmem:[#allocation6] sm:$0xff] 0.0
          %s304 = smul.u32 4, 4
          %s305 = smul.u32 %s304, 4
          %s306 = sshll.u32 %s305, 4
          %307 = dma.done [#allocation4], %s306
          %s308 = smul.u32 4, 16
          %s309 = smul.u32 %s308, 4
          %s310 = sshll.u32 %s309, 4
          %311 = dma.done %s267, %s310
        $region40: #{tpu_custom_call.1} parent=31 // pred_fallthru
          _
        %v312 = vld [vmem:[%s194] sm:$0xff]
        %v313 = vld [vmem:[%s194 + $0x8] sm:$0xff]
        %v314 = vld [vmem:[%s194 + $0x10] sm:$0xff]
        %v315 = vld [vmem:[%s194 + $0x18] sm:$0xff]
        %v316 = vld [vmem:[%s194 + $0x20] sm:$0xff]
        %v317 = vld [vmem:[%s194 + $0x28] sm:$0xff]
        %v318 = vld [vmem:[%s194 + $0x30] sm:$0xff]
        %v319 = vld [vmem:[%s194 + $0x38] sm:$0xff]
        %v320 = vpack.c.bf16 %v313, %v312
        %v321 = vpack.c.bf16 %v315, %v314
        %v322 = vpack.c.bf16 %v317, %v316
        %v323 = vpack.c.bf16 %v319, %v318
        %v324 = vld [vmem:[#allocation2] sm:$0xff]
        %v325 = vld [vmem:[#allocation2 + $0x8] sm:$0xff]
        %v326 = vld [vmem:[#allocation2 + $0x10] sm:$0xff]
        %v327 = vld [vmem:[#allocation2 + $0x18] sm:$0xff]
        %v328 = vld [vmem:[#allocation2 + $0x20] sm:$0xff]
        %v329 = vld [vmem:[#allocation2 + $0x28] sm:$0xff]
        %v330 = vld [vmem:[#allocation2 + $0x30] sm:$0xff]
        %v331 = vld [vmem:[#allocation2 + $0x38] sm:$0xff]
        %v332 = vld [vmem:[%s2] sm:$0xf]
        %v334 = vlaneseq
        %v335 = vshrl.u32 %v334, 7
        %v336 = vsub.s32 0, %v335
        %v337 = vrot.slane %v332, %v336
        %v338 = vlaneseq
        %v339 = vshrl.u32 %v338, 7
        %v340 = vsub.s32 1, %v339
        %v341 = vrot.slane %v332, %v340
        %v342 = vlaneseq
        %v343 = vshrl.u32 %v342, 7
        %v344 = vsub.s32 2, %v343
        %v345 = vrot.slane %v332, %v344
        %v346 = vlaneseq
        %v347 = vshrl.u32 %v346, 7
        %v348 = vsub.s32 3, %v347
        %v349 = vrot.slane %v332, %v348
        %vm354 = vcmask 261120
        %v356 = vsel %vm354, %v320, 0
        %v359 = vsel %vm354, %v321, 0
        %v362 = vsel %vm354, %v322, 0
        %v365 = vsel %vm354, %v323, 0
        %367 = vmatprep.subr.bf16.mxu0 %v325
        %368 = vmatpush1.bf16.msra.mxu0 %v324
        %369 = vmatprep.subr.bf16.mxu0 %v329
        %370 = vmatpush1.bf16.msra.mxu0 %v328
        %371 = vmatprep.subr.bf16.mxu0 0
        %372 = vmatpush1.bf16.msra.mxu0 0
        %373 = vmatprep.subr.bf16.mxu0 0
        %374 = vmatpush1.bf16.msra.mxu0 0
        %375 = vmatprep.subr.bf16.mxu0 0
        %376 = vmatpush1.bf16.msra.mxu0 0
        %377 = vmatprep.subr.bf16.mxu0 0
        %378 = vmatpush1.bf16.msra.mxu0 0
        %379 = vmatprep.subr.bf16.mxu0 0
        %380 = vmatpush1.bf16.msra.mxu0 0
        %381 = vmatprep.subr.bf16.mxu0 0
        %382 = vmatpush1.bf16.msra.mxu0 0
        %383 = vmatprep.subr.bf16.mxu0 0
        %384 = vmatpush1.bf16.msra.mxu0 0
        %385 = vmatprep.subr.bf16.mxu0 0
        %386 = vmatpush1.bf16.msra.mxu0 0
        %387 = vmatprep.subr.bf16.mxu0 0
        %388 = vmatpush1.bf16.msra.mxu0 0
        %389 = vmatprep.subr.bf16.mxu0 0
        %390 = vmatpush1.bf16.msra.mxu0 0
        %391 = vmatprep.subr.bf16.mxu0 0
        %392 = vmatpush1.bf16.msra.mxu0 0
        %393 = vmatprep.subr.bf16.mxu0 0
        %394 = vmatpush1.bf16.msra.mxu0 0
        %395 = vmatprep.subr.bf16.mxu0 0
        %396 = vmatpush1.bf16.msra.mxu0 0
        %397 = vmatprep.subr.bf16.mxu0 0
        %398 = vmatpush1.bf16.msra.mxu0 0
        %399 = vmatprep.mubr.bf16.mxu0 0
        %400 = vmatmul.mubr.bf16.gmra.mrb[0].mxu0 %v356
        %v401 = vpop.f32.mrb[0].mxu0
        %v402 = vadd.f32 %v337, %v401
        %v403 = vpop.f32.mrb[0].mxu0
        %v404 = vadd.f32 %v341, %v403
        %v405 = vpop.f32.mrb[0].mxu0
        %v406 = vadd.f32 %v337, %v405
        %v407 = vpop.f32.mrb[0].mxu0
        %v408 = vadd.f32 %v341, %v407
        %409 = vmatprep.mubr.bf16.mxu0 0
        %410 = vmatmul.mubr.bf16.gmra.mrb[0].mxu0 %v359
        %v411 = vpop.f32.mrb[0].mxu0
        %v412 = vadd.f32 %v337, %v411
        %v413 = vpop.f32.mrb[0].mxu0
        %v414 = vadd.f32 %v341, %v413
        %v415 = vpop.f32.mrb[0].mxu0
        %v416 = vadd.f32 %v337, %v415
        %v417 = vpop.f32.mrb[0].mxu0
        %v418 = vadd.f32 %v341, %v417
        %419 = vmatprep.mubr.bf16.mxu0 0
        %420 = vmatmul.mubr.bf16.gmra.mrb[0].mxu0 %v362
        %v421 = vpop.f32.mrb[0].mxu0
        %v422 = vadd.f32 %v337, %v421
        %v423 = vpop.f32.mrb[0].mxu0
        %v424 = vadd.f32 %v341, %v423
        %v425 = vpop.f32.mrb[0].mxu0
        %v426 = vadd.f32 %v337, %v425
        %v427 = vpop.f32.mrb[0].mxu0
        %v428 = vadd.f32 %v341, %v427
        %429 = vmatprep.mubr.bf16.mxu0 0
        %430 = vmatmul.mubr.bf16.gmra.mrb[0].mxu0 %v365
        %v431 = vpop.f32.mrb[0].mxu0
        %v432 = vadd.f32 %v337, %v431
        %v433 = vpop.f32.mrb[0].mxu0
        %v434 = vadd.f32 %v341, %v433
        %v435 = vpop.f32.mrb[0].mxu0
        %v436 = vadd.f32 %v337, %v435
        %v437 = vpop.f32.mrb[0].mxu0
        %v438 = vadd.f32 %v341, %v437
        %439 = vdwg.mxu0
        %440 = vmatprep.subr.bf16.mxu0 %v327
        %441 = vmatpush1.bf16.msra.mxu0 %v326
        %442 = vmatprep.subr.bf16.mxu0 %v331
        %443 = vmatpush1.bf16.msra.mxu0 %v330
        %444 = vmatprep.subr.bf16.mxu0 0
        %445 = vmatpush1.bf16.msra.mxu0 0
        %446 = vmatprep.subr.bf16.mxu0 0
        %447 = vmatpush1.bf16.msra.mxu0 0
        %448 = vmatprep.subr.bf16.mxu0 0
        %449 = vmatpush1.bf16.msra.mxu0 0
        %450 = vmatprep.subr.bf16.mxu0 0
        %451 = vmatpush1.bf16.msra.mxu0 0
        %452 = vmatprep.subr.bf16.mxu0 0
        %453 = vmatpush1.bf16.msra.mxu0 0
        %454 = vmatprep.subr.bf16.mxu0 0
        %455 = vmatpush1.bf16.msra.mxu0 0
        %456 = vmatprep.subr.bf16.mxu0 0
        %457 = vmatpush1.bf16.msra.mxu0 0
        %458 = vmatprep.subr.bf16.mxu0 0
        %459 = vmatpush1.bf16.msra.mxu0 0
        %460 = vmatprep.subr.bf16.mxu0 0
        %461 = vmatpush1.bf16.msra.mxu0 0
        %462 = vmatprep.subr.bf16.mxu0 0
        %463 = vmatpush1.bf16.msra.mxu0 0
        %464 = vmatprep.subr.bf16.mxu0 0
        %465 = vmatpush1.bf16.msra.mxu0 0
        %466 = vmatprep.subr.bf16.mxu0 0
        %467 = vmatpush1.bf16.msra.mxu0 0
        %468 = vmatprep.subr.bf16.mxu0 0
        %469 = vmatpush1.bf16.msra.mxu0 0
        %470 = vmatprep.subr.bf16.mxu0 0
        %471 = vmatpush1.bf16.msra.mxu0 0
        %472 = vmatprep.mubr.bf16.mxu0 0
        %473 = vmatmul.mubr.bf16.gmra.mrb[0].mxu0 %v356
        %v474 = vpop.f32.mrb[0].mxu0
        %v475 = vadd.f32 %v345, %v474
        %v476 = vpop.f32.mrb[0].mxu0
        %v477 = vadd.f32 %v349, %v476
        %v478 = vpop.f32.mrb[0].mxu0
        %v479 = vadd.f32 %v345, %v478
        %v480 = vpop.f32.mrb[0].mxu0
        %v481 = vadd.f32 %v349, %v480
        %482 = vmatprep.mubr.bf16.mxu0 0
        %483 = vmatmul.mubr.bf16.gmra.mrb[0].mxu0 %v359
        %v484 = vpop.f32.mrb[0].mxu0
        %v485 = vadd.f32 %v345, %v484
        %v486 = vpop.f32.mrb[0].mxu0
        %v487 = vadd.f32 %v349, %v486
        %v488 = vpop.f32.mrb[0].mxu0
        %v489 = vadd.f32 %v345, %v488
        %v490 = vpop.f32.mrb[0].mxu0
        %v491 = vadd.f32 %v349, %v490
        %492 = vmatprep.mubr.bf16.mxu0 0
        %493 = vmatmul.mubr.bf16.gmra.mrb[0].mxu0 %v362
        %v494 = vpop.f32.mrb[0].mxu0
        %v495 = vadd.f32 %v345, %v494
        %v496 = vpop.f32.mrb[0].mxu0
        %v497 = vadd.f32 %v349, %v496
        %v498 = vpop.f32.mrb[0].mxu0
        %v499 = vadd.f32 %v345, %v498
        %v500 = vpop.f32.mrb[0].mxu0
        %v501 = vadd.f32 %v349, %v500
        %502 = vmatprep.mubr.bf16.mxu0 0
        %503 = vmatmul.mubr.bf16.gmra.mrb[0].mxu0 %v365
        %v504 = vpop.f32.mrb[0].mxu0
        %v505 = vadd.f32 %v345, %v504
        %v506 = vpop.f32.mrb[0].mxu0
        %v507 = vadd.f32 %v349, %v506
        %v508 = vpop.f32.mrb[0].mxu0
        %v509 = vadd.f32 %v345, %v508
        %v510 = vpop.f32.mrb[0].mxu0
        %v511 = vadd.f32 %v349, %v510
        %512 = vdwg.mxu0
        %513 = vst [vmem:[#allocation7] sm:$0xff] %v402
        %514 = vst [vmem:[#allocation7 + $0x8] sm:$0xff] %v404
        %515 = vst [vmem:[#allocation7 + $0x10] sm:$0xff] %v475
        %516 = vst [vmem:[#allocation7 + $0x18] sm:$0xff] %v477
        %517 = vst [vmem:[#allocation7 + $0x20] sm:$0xff] %v406
        %518 = vst [vmem:[#allocation7 + $0x28] sm:$0xff] %v408
        %519 = vst [vmem:[#allocation7 + $0x30] sm:$0xff] %v479
        %520 = vst [vmem:[#allocation7 + $0x38] sm:$0xff] %v481
        %521 = vst [vmem:[#allocation7 + $0x40] sm:$0xff] %v412
        %522 = vst [vmem:[#allocation7 + $0x48] sm:$0xff] %v414
        %523 = vst [vmem:[#allocation7 + $0x50] sm:$0xff] %v485
        %524 = vst [vmem:[#allocation7 + $0x58] sm:$0xff] %v487
        %525 = vst [vmem:[#allocation7 + $0x60] sm:$0xff] %v416
        %526 = vst [vmem:[#allocation7 + $0x68] sm:$0xff] %v418
        %527 = vst [vmem:[#allocation7 + $0x70] sm:$0xff] %v489
        %528 = vst [vmem:[#allocation7 + $0x78] sm:$0xff] %v491
        %529 = vst [vmem:[#allocation7 + $0x80] sm:$0xff] %v422
        %530 = vst [vmem:[#allocation7 + $0x88] sm:$0xff] %v424
        %531 = vst [vmem:[#allocation7 + $0x90] sm:$0xff] %v495
        %532 = vst [vmem:[#allocation7 + $0x98] sm:$0xff] %v497
        %533 = vst [vmem:[#allocation7 + $0xa0] sm:$0xff] %v426
        %534 = vst [vmem:[#allocation7 + $0xa8] sm:$0xff] %v428
        %535 = vst [vmem:[#allocation7 + $0xb0] sm:$0xff] %v499
        %536 = vst [vmem:[#allocation7 + $0xb8] sm:$0xff] %v501
        %537 = vst [vmem:[#allocation7 + $0xc0] sm:$0xff] %v432
        %538 = vst [vmem:[#allocation7 + $0xc8] sm:$0xff] %v434
        %539 = vst [vmem:[#allocation7 + $0xd0] sm:$0xff] %v505
        %540 = vst [vmem:[#allocation7 + $0xd8] sm:$0xff] %v507
        %541 = vst [vmem:[#allocation7 + $0xe0] sm:$0xff] %v436
        %542 = vst [vmem:[#allocation7 + $0xe8] sm:$0xff] %v438
        %543 = vst [vmem:[#allocation7 + $0xf0] sm:$0xff] %v509
        %544 = vst [vmem:[#allocation7 + $0xf8] sm:$0xff] %v511
        %v545 = vld [vmem:[%s225] sm:$0xff]
        %s546 = smul.u32 %s27, 8
        %s547 = smul.u32 0, 4
        %s548 = smul.addr %s547, 8
        %s549 = scalar_lea.vmem [#allocation7], %s548
        %v550 = vld [vmem:[%s549] sm:$0xff]
        %v551 = vld [vmem:[%s549 + $0x8] sm:$0xff]
        %v552 = vld [vmem:[%s549 + $0x10] sm:$0xff]
        %v553 = vld [vmem:[%s549 + $0x18] sm:$0xff]
        %v554 = vld [vmem:[#allocation5] sm:$0xff]
        %v555 = vpack.c.bf16 %v554, %v554
        %v556 = vld [vmem:[#allocation3] sm:$0xff]
        %v557 = vld [vmem:[#allocation3 + $0x8] sm:$0xff]
        %v558 = vld [vmem:[#allocation3 + $0x10] sm:$0xff]
        %v559 = vld [vmem:[#allocation3 + $0x18] sm:$0xff]
        %v560 = vld [vmem:[#allocation3 + $0x20] sm:$0xff]
        %v561 = vld [vmem:[#allocation3 + $0x28] sm:$0xff]
        %v562 = vld [vmem:[#allocation3 + $0x30] sm:$0xff]
        %v563 = vld [vmem:[#allocation3 + $0x38] sm:$0xff]
        %v564 = vld [vmem:[#allocation3 + $0x40] sm:$0xff]
        %v565 = vld [vmem:[#allocation3 + $0x48] sm:$0xff]
        %v566 = vld [vmem:[#allocation3 + $0x50] sm:$0xff]
        %v567 = vld [vmem:[#allocation3 + $0x58] sm:$0xff]
        %v568 = vld [vmem:[#allocation3 + $0x60] sm:$0xff]
        %v569 = vld [vmem:[#allocation3 + $0x68] sm:$0xff]
        %v570 = vld [vmem:[#allocation3 + $0x70] sm:$0xff]
        %v571 = vld [vmem:[#allocation3 + $0x78] sm:$0xff]
        %v572 = vld [vmem:[#allocation3 + $0x80] sm:$0xff]
        %v573 = vld [vmem:[#allocation3 + $0x88] sm:$0xff]
        %v574 = vld [vmem:[#allocation3 + $0x90] sm:$0xff]
        %v575 = vld [vmem:[#allocation3 + $0x98] sm:$0xff]
        %v576 = vld [vmem:[#allocation3 + $0xa0] sm:$0xff]
        %v577 = vld [vmem:[#allocation3 + $0xa8] sm:$0xff]
        %v578 = vld [vmem:[#allocation3 + $0xb0] sm:$0xff]
        %v579 = vld [vmem:[#allocation3 + $0xb8] sm:$0xff]
        %v580 = vld [vmem:[#allocation3 + $0xc0] sm:$0xff]
        %v581 = vld [vmem:[#allocation3 + $0xc8] sm:$0xff]
        %v582 = vld [vmem:[#allocation3 + $0xd0] sm:$0xff]
        %v583 = vld [vmem:[#allocation3 + $0xd8] sm:$0xff]
        %v584 = vld [vmem:[#allocation3 + $0xe0] sm:$0xff]
        %v585 = vld [vmem:[#allocation3 + $0xe8] sm:$0xff]
        %v586 = vld [vmem:[#allocation3 + $0xf0] sm:$0xff]
        %v587 = vld [vmem:[#allocation3 + $0xf8] sm:$0xff]
        %588 = vmatprep.subr.bf16.mxu0 %v557
        %589 = vmatpush1.bf16.msra.mxu0 %v556
        %590 = vmatprep.subr.bf16.mxu0 %v561
        %591 = vmatpush1.bf16.msra.mxu0 %v560
        %592 = vmatprep.subr.bf16.mxu0 %v565
        %593 = vmatpush1.bf16.msra.mxu0 %v564
        %594 = vmatprep.subr.bf16.mxu0 %v569
        %595 = vmatpush1.bf16.msra.mxu0 %v568
        %596 = vmatprep.subr.bf16.mxu0 %v573
        %597 = vmatpush1.bf16.msra.mxu0 %v572
        %598 = vmatprep.subr.bf16.mxu0 %v577
        %599 = vmatpush1.bf16.msra.mxu0 %v576
        %600 = vmatprep.subr.bf16.mxu0 %v581
        %601 = vmatpush1.bf16.msra.mxu0 %v580
        %602 = vmatprep.subr.bf16.mxu0 %v585
        %603 = vmatpush1.bf16.msra.mxu0 %v584
        %604 = vmatprep.subr.bf16.mxu0 0
        %605 = vmatpush1.bf16.msra.mxu0 0
        %606 = vmatprep.subr.bf16.mxu0 0
        %607 = vmatpush1.bf16.msra.mxu0 0
        %608 = vmatprep.subr.bf16.mxu0 0
        %609 = vmatpush1.bf16.msra.mxu0 0
        %610 = vmatprep.subr.bf16.mxu0 0
        %611 = vmatpush1.bf16.msra.mxu0 0
        %612 = vmatprep.subr.bf16.mxu0 0
        %613 = vmatpush1.bf16.msra.mxu0 0
        %614 = vmatprep.subr.bf16.mxu0 0
        %615 = vmatpush1.bf16.msra.mxu0 0
        %616 = vmatprep.subr.bf16.mxu0 0
        %617 = vmatpush1.bf16.msra.mxu0 0
        %618 = vmatprep.subr.bf16.mxu0 0
        %619 = vmatpush1.bf16.msra.mxu0 0
        %620 = vmatprep.mubr.bf16.mxu0 0
        %621 = vmatmul.mubr.bf16.gmra.mrb[0].mxu0 %v555
        %v622 = vpop.f32.mrb[0].mxu0
        %v623 = vadd.f32 0.0, %v622
        %v624 = vpop.f32.mrb[0].mxu0
        %v625 = vadd.f32 0.0, %v624
        %v626 = vpop.f32.mrb[0].mxu0
        %v627 = vpop.f32.mrb[0].mxu0
        %628 = vdwg.mxu0
        %629 = vmatprep.subr.bf16.mxu0 %v559
        %630 = vmatpush1.bf16.msra.mxu0 %v558
        %631 = vmatprep.subr.bf16.mxu0 %v563
        %632 = vmatpush1.bf16.msra.mxu0 %v562
        %633 = vmatprep.subr.bf16.mxu0 %v567
        %634 = vmatpush1.bf16.msra.mxu0 %v566
        %635 = vmatprep.subr.bf16.mxu0 %v571
        %636 = vmatpush1.bf16.msra.mxu0 %v570
        %637 = vmatprep.subr.bf16.mxu0 %v575
        %638 = vmatpush1.bf16.msra.mxu0 %v574
        %639 = vmatprep.subr.bf16.mxu0 %v579
        %640 = vmatpush1.bf16.msra.mxu0 %v578
        %641 = vmatprep.subr.bf16.mxu0 %v583
        %642 = vmatpush1.bf16.msra.mxu0 %v582
        %643 = vmatprep.subr.bf16.mxu0 %v587
        %644 = vmatpush1.bf16.msra.mxu0 %v586
        %645 = vmatprep.subr.bf16.mxu0 0
        %646 = vmatpush1.bf16.msra.mxu0 0
        %647 = vmatprep.subr.bf16.mxu0 0
        %648 = vmatpush1.bf16.msra.mxu0 0
        %649 = vmatprep.subr.bf16.mxu0 0
        %650 = vmatpush1.bf16.msra.mxu0 0
        %651 = vmatprep.subr.bf16.mxu0 0
        %652 = vmatpush1.bf16.msra.mxu0 0
        %653 = vmatprep.subr.bf16.mxu0 0
        %654 = vmatpush1.bf16.msra.mxu0 0
        %655 = vmatprep.subr.bf16.mxu0 0
        %656 = vmatpush1.bf16.msra.mxu0 0
        %657 = vmatprep.subr.bf16.mxu0 0
        %658 = vmatpush1.bf16.msra.mxu0 0
        %659 = vmatprep.subr.bf16.mxu0 0
        %660 = vmatpush1.bf16.msra.mxu0 0
        %661 = vmatprep.mubr.bf16.mxu0 0
        %662 = vmatmul.mubr.bf16.gmra.mrb[0].mxu0 %v555
        %v663 = vpop.f32.mrb[0].mxu0
        %v664 = vadd.f32 0.0, %v663
        %v665 = vpop.f32.mrb[0].mxu0
        %v666 = vadd.f32 0.0, %v665
        %v667 = vpop.f32.mrb[0].mxu0
        %v668 = vpop.f32.mrb[0].mxu0
        %669 = vdwg.mxu0
        %v670 = vadd.f32 %v550, %v623
        %v671 = vadd.f32 %v551, %v625
        %v672 = vadd.f32 %v552, %v664
        %v673 = vadd.f32 %v553, %v666
        %v674 = vxor.u32 %v670, 2147483648
        %v675 = vmul.f32 %v674, 1.442695
        %v676 = vpow.pop %v675
        %v677 = vadd.f32 %v676, 1.0
        %v678 = vrcp.pop %v677
        %v679 = vmul.f32 1.0, %v678
        %v680 = vxor.u32 %v671, 2147483648
        %v681 = vmul.f32 %v680, 1.442695
        %v682 = vpow.pop %v681
        %v683 = vadd.f32 %v682, 1.0
        %v684 = vrcp.pop %v683
        %v685 = vmul.f32 1.0, %v684
        %v686 = vtanh.pop %v672
        %v687 = vxor.u32 %v673, 2147483648
        %v688 = vmul.f32 %v687, 1.442695
        %v689 = vpow.pop %v688
        %v690 = vadd.f32 %v689, 1.0
        %v691 = vrcp.pop %v690
        %v692 = vmul.f32 1.0, %v691
        %v693 = vld [vmem:[#allocation6] sm:$0xff]
        %v694 = vmul.f32 %v685, %v693
        %v695 = vmul.f32 %v679, %v686
        %v696 = vadd.f32 %v694, %v695
        %v697 = vtanh.pop %v696
        %v698 = vmul.f32 %v692, %v697
        %699 = vst [vmem:[#allocation6] sm:$0xff] %v696
        %700 = vst [vmem:[#allocation5] sm:$0xff] %v698
        %v701 = vstv %s546
        %vm702 = vcmp.gt.s32.totalorder %v545, %v701
        %v703 = vsel %vm702, 1, 0
        %v704 = vcvt.s32.f32 %v703
        %706 = vset.pattern.permute.xlu0 0
        %707 = vperm.xlu0 %706, %v704
        %v708 = vpop.permute.xlu0 %707
        %v710 = vmul.f32 %v698, %v708
        %711 = vst [vmem:[%s220] sm:$0xff] %v710
        %s712 = smul.u32 1, 4
        %s713 = smul.addr %s712, 8
        %s714 = scalar_lea.vmem [#allocation7], %s713
        %v715 = vld [vmem:[%s714] sm:$0xff]
        %v716 = vld [vmem:[%s714 + $0x8] sm:$0xff]
        %v717 = vld [vmem:[%s714 + $0x10] sm:$0xff]
        %v718 = vld [vmem:[%s714 + $0x18] sm:$0xff]
        %v719 = vld [vmem:[#allocation5] sm:$0xff]
        %v720 = vpack.c.bf16 %v719, %v719
        %v721 = vld [vmem:[#allocation3] sm:$0xff]
        %v722 = vld [vmem:[#allocation3 + $0x8] sm:$0xff]
        %v723 = vld [vmem:[#allocation3 + $0x10] sm:$0xff]
        %v724 = vld [vmem:[#allocation3 + $0x18] sm:$0xff]
        %v725 = vld [vmem:[#allocation3 + $0x20] sm:$0xff]
        %v726 = vld [vmem:[#allocation3 + $0x28] sm:$0xff]
        %v727 = vld [vmem:[#allocation3 + $0x30] sm:$0xff]
        %v728 = vld [vmem:[#allocation3 + $0x38] sm:$0xff]
        %v729 = vld [vmem:[#allocation3 + $0x40] sm:$0xff]
        %v730 = vld [vmem:[#allocation3 + $0x48] sm:$0xff]
        %v731 = vld [vmem:[#allocation3 + $0x50] sm:$0xff]
        %v732 = vld [vmem:[#allocation3 + $0x58] sm:$0xff]
        %v733 = vld [vmem:[#allocation3 + $0x60] sm:$0xff]
        %v734 = vld [vmem:[#allocation3 + $0x68] sm:$0xff]
        %v735 = vld [vmem:[#allocation3 + $0x70] sm:$0xff]
        %v736 = vld [vmem:[#allocation3 + $0x78] sm:$0xff]
        %v737 = vld [vmem:[#allocation3 + $0x80] sm:$0xff]
        %v738 = vld [vmem:[#allocation3 + $0x88] sm:$0xff]
        %v739 = vld [vmem:[#allocation3 + $0x90] sm:$0xff]
        %v740 = vld [vmem:[#allocation3 + $0x98] sm:$0xff]
        %v741 = vld [vmem:[#allocation3 + $0xa0] sm:$0xff]
        %v742 = vld [vmem:[#allocation3 + $0xa8] sm:$0xff]
        %v743 = vld [vmem:[#allocation3 + $0xb0] sm:$0xff]
        %v744 = vld [vmem:[#allocation3 + $0xb8] sm:$0xff]
        %v745 = vld [vmem:[#allocation3 + $0xc0] sm:$0xff]
        %v746 = vld [vmem:[#allocation3 + $0xc8] sm:$0xff]
        %v747 = vld [vmem:[#allocation3 + $0xd0] sm:$0xff]
        %v748 = vld [vmem:[#allocation3 + $0xd8] sm:$0xff]
        %v749 = vld [vmem:[#allocation3 + $0xe0] sm:$0xff]
        %v750 = vld [vmem:[#allocation3 + $0xe8] sm:$0xff]
        %v751 = vld [vmem:[#allocation3 + $0xf0] sm:$0xff]
        %v752 = vld [vmem:[#allocation3 + $0xf8] sm:$0xff]
        %753 = vmatprep.subr.bf16.mxu0 %v722
        %754 = vmatpush1.bf16.msra.mxu0 %v721
        %755 = vmatprep.subr.bf16.mxu0 %v726
        %756 = vmatpush1.bf16.msra.mxu0 %v725
        %757 = vmatprep.subr.bf16.mxu0 %v730
        %758 = vmatpush1.bf16.msra.mxu0 %v729
        %759 = vmatprep.subr.bf16.mxu0 %v734
        %760 = vmatpush1.bf16.msra.mxu0 %v733
        %761 = vmatprep.subr.bf16.mxu0 %v738
        %762 = vmatpush1.bf16.msra.mxu0 %v737
        %763 = vmatprep.subr.bf16.mxu0 %v742
        %764 = vmatpush1.bf16.msra.mxu0 %v741
        %765 = vmatprep.subr.bf16.mxu0 %v746
        %766 = vmatpush1.bf16.msra.mxu0 %v745
        %767 = vmatprep.subr.bf16.mxu0 %v750
        %768 = vmatpush1.bf16.msra.mxu0 %v749
        %769 = vmatprep.subr.bf16.mxu0 0
        %770 = vmatpush1.bf16.msra.mxu0 0
        %771 = vmatprep.subr.bf16.mxu0 0
        %772 = vmatpush1.bf16.msra.mxu0 0
        %773 = vmatprep.subr.bf16.mxu0 0
        %774 = vmatpush1.bf16.msra.mxu0 0
        %775 = vmatprep.subr.bf16.mxu0 0
        %776 = vmatpush1.bf16.msra.mxu0 0
        %777 = vmatprep.subr.bf16.mxu0 0
        %778 = vmatpush1.bf16.msra.mxu0 0
        %779 = vmatprep.subr.bf16.mxu0 0
        %780 = vmatpush1.bf16.msra.mxu0 0
        %781 = vmatprep.subr.bf16.mxu0 0
        %782 = vmatpush1.bf16.msra.mxu0 0
        %783 = vmatprep.subr.bf16.mxu0 0
        %784 = vmatpush1.bf16.msra.mxu0 0
        %785 = vmatprep.mubr.bf16.mxu0 0
        %786 = vmatmul.mubr.bf16.gmra.mrb[0].mxu0 %v720
        %v787 = vpop.f32.mrb[0].mxu0
        %v788 = vadd.f32 0.0, %v787
        %v789 = vpop.f32.mrb[0].mxu0
        %v790 = vadd.f32 0.0, %v789
        %v791 = vpop.f32.mrb[0].mxu0
        %v792 = vpop.f32.mrb[0].mxu0
        %793 = vdwg.mxu0
        %794 = vmatprep.subr.bf16.mxu0 %v724
        %795 = vmatpush1.bf16.msra.mxu0 %v723
        %796 = vmatprep.subr.bf16.mxu0 %v728
        %797 = vmatpush1.bf16.msra.mxu0 %v727
        %798 = vmatprep.subr.bf16.mxu0 %v732
        %799 = vmatpush1.bf16.msra.mxu0 %v731
        %800 = vmatprep.subr.bf16.mxu0 %v736
        %801 = vmatpush1.bf16.msra.mxu0 %v735
        %802 = vmatprep.subr.bf16.mxu0 %v740
        %803 = vmatpush1.bf16.msra.mxu0 %v739
        %804 = vmatprep.subr.bf16.mxu0 %v744
        %805 = vmatpush1.bf16.msra.mxu0 %v743
        %806 = vmatprep.subr.bf16.mxu0 %v748
        %807 = vmatpush1.bf16.msra.mxu0 %v747
        %808 = vmatprep.subr.bf16.mxu0 %v752
        %809 = vmatpush1.bf16.msra.mxu0 %v751
        %810 = vmatprep.subr.bf16.mxu0 0
        %811 = vmatpush1.bf16.msra.mxu0 0
        %812 = vmatprep.subr.bf16.mxu0 0
        %813 = vmatpush1.bf16.msra.mxu0 0
        %814 = vmatprep.subr.bf16.mxu0 0
        %815 = vmatpush1.bf16.msra.mxu0 0
        %816 = vmatprep.subr.bf16.mxu0 0
        %817 = vmatpush1.bf16.msra.mxu0 0
        %818 = vmatprep.subr.bf16.mxu0 0
        %819 = vmatpush1.bf16.msra.mxu0 0
        %820 = vmatprep.subr.bf16.mxu0 0
        %821 = vmatpush1.bf16.msra.mxu0 0
        %822 = vmatprep.subr.bf16.mxu0 0
        %823 = vmatpush1.bf16.msra.mxu0 0
        %824 = vmatprep.subr.bf16.mxu0 0
        %825 = vmatpush1.bf16.msra.mxu0 0
        %826 = vmatprep.mubr.bf16.mxu0 0
        %827 = vmatmul.mubr.bf16.gmra.mrb[0].mxu0 %v720
        %v828 = vpop.f32.mrb[0].mxu0
        %v829 = vadd.f32 0.0, %v828
        %v830 = vpop.f32.mrb[0].mxu0
        %v831 = vadd.f32 0.0, %v830
        %v832 = vpop.f32.mrb[0].mxu0
        %v833 = vpop.f32.mrb[0].mxu0
        %834 = vdwg.mxu0
        %v835 = vadd.f32 %v715, %v788
        %v836 = vadd.f32 %v716, %v790
        %v837 = vadd.f32 %v717, %v829
        %v838 = vadd.f32 %v718, %v831
        %v839 = vxor.u32 %v835, 2147483648
        %v840 = vmul.f32 %v839, 1.442695
        %v841 = vpow.pop %v840
        %v842 = vadd.f32 %v841, 1.0
        %v843 = vrcp.pop %v842
        %v844 = vmul.f32 1.0, %v843
        %v845 = vxor.u32 %v836, 2147483648
        %v846 = vmul.f32 %v845, 1.442695
        %v847 = vpow.pop %v846
        %v848 = vadd.f32 %v847, 1.0
        %v849 = vrcp.pop %v848
        %v850 = vmul.f32 1.0, %v849
        %v851 = vtanh.pop %v837
        %v852 = vxor.u32 %v838, 2147483648
        %v853 = vmul.f32 %v852, 1.442695
        %v854 = vpow.pop %v853
        %v855 = vadd.f32 %v854, 1.0
        %v856 = vrcp.pop %v855
        %v857 = vmul.f32 1.0, %v856
        %v858 = vld [vmem:[#allocation6] sm:$0xff]
        %v859 = vmul.f32 %v850, %v858
        %v860 = vmul.f32 %v844, %v851
        %v861 = vadd.f32 %v859, %v860
        %v862 = vtanh.pop %v861
        %v863 = vmul.f32 %v857, %v862
        %864 = vst [vmem:[#allocation6] sm:$0xff] %v861
        %865 = vst [vmem:[#allocation5] sm:$0xff] %v863
        %s866 = sadd.s32 %s546, 1
        %v867 = vstv %s866
        %vm868 = vcmp.gt.s32.totalorder %v545, %v867
        %v869 = vsel %vm868, 1, 0
        %v870 = vcvt.s32.f32 %v869
        %872 = vset.pattern.permute.xlu0 0
        %873 = vperm.xlu0 %872, %v870
        %v874 = vpop.permute.xlu0 %873
        %v876 = vmul.f32 %v863, %v874
        %s877 = scalar_lea.vmem %s220, 8 [#allocation11]
        %878 = vst [vmem:[%s877] sm:$0xff] %v876
        %s879 = smul.u32 2, 4
        %s880 = smul.addr %s879, 8
        %s881 = scalar_lea.vmem [#allocation7], %s880
        %v882 = vld [vmem:[%s881] sm:$0xff]
        %v883 = vld [vmem:[%s881 + $0x8] sm:$0xff]
        %v884 = vld [vmem:[%s881 + $0x10] sm:$0xff]
        %v885 = vld [vmem:[%s881 + $0x18] sm:$0xff]
        %v886 = vld [vmem:[#allocation5] sm:$0xff]
        %v887 = vpack.c.bf16 %v886, %v886
        %v888 = vld [vmem:[#allocation3] sm:$0xff]
        %v889 = vld [vmem:[#allocation3 + $0x8] sm:$0xff]
        %v890 = vld [vmem:[#allocation3 + $0x10] sm:$0xff]
        %v891 = vld [vmem:[#allocation3 + $0x18] sm:$0xff]
        %v892 = vld [vmem:[#allocation3 + $0x20] sm:$0xff]
        %v893 = vld [vmem:[#allocation3 + $0x28] sm:$0xff]
        %v894 = vld [vmem:[#allocation3 + $0x30] sm:$0xff]
        %v895 = vld [vmem:[#allocation3 + $0x38] sm:$0xff]
        %v896 = vld [vmem:[#allocation3 + $0x40] sm:$0xff]
        %v897 = vld [vmem:[#allocation3 + $0x48] sm:$0xff]
        %v898 = vld [vmem:[#allocation3 + $0x50] sm:$0xff]
        %v899 = vld [vmem:[#allocation3 + $0x58] sm:$0xff]
        %v900 = vld [vmem:[#allocation3 + $0x60] sm:$0xff]
        %v901 = vld [vmem:[#allocation3 + $0x68] sm:$0xff]
        %v902 = vld [vmem:[#allocation3 + $0x70] sm:$0xff]
        %v903 = vld [vmem:[#allocation3 + $0x78] sm:$0xff]
        %v904 = vld [vmem:[#allocation3 + $0x80] sm:$0xff]
        %v905 = vld [vmem:[#allocation3 + $0x88] sm:$0xff]
        %v906 = vld [vmem:[#allocation3 + $0x90] sm:$0xff]
        %v907 = vld [vmem:[#allocation3 + $0x98] sm:$0xff]
        %v908 = vld [vmem:[#allocation3 + $0xa0] sm:$0xff]
        %v909 = vld [vmem:[#allocation3 + $0xa8] sm:$0xff]
        %v910 = vld [vmem:[#allocation3 + $0xb0] sm:$0xff]
        %v911 = vld [vmem:[#allocation3 + $0xb8] sm:$0xff]
        %v912 = vld [vmem:[#allocation3 + $0xc0] sm:$0xff]
        %v913 = vld [vmem:[#allocation3 + $0xc8] sm:$0xff]
        %v914 = vld [vmem:[#allocation3 + $0xd0] sm:$0xff]
        %v915 = vld [vmem:[#allocation3 + $0xd8] sm:$0xff]
        %v916 = vld [vmem:[#allocation3 + $0xe0] sm:$0xff]
        %v917 = vld [vmem:[#allocation3 + $0xe8] sm:$0xff]
        %v918 = vld [vmem:[#allocation3 + $0xf0] sm:$0xff]
        %v919 = vld [vmem:[#allocation3 + $0xf8] sm:$0xff]
        %920 = vmatprep.subr.bf16.mxu0 %v889
        %921 = vmatpush1.bf16.msra.mxu0 %v888
        %922 = vmatprep.subr.bf16.mxu0 %v893
        %923 = vmatpush1.bf16.msra.mxu0 %v892
        %924 = vmatprep.subr.bf16.mxu0 %v897
        %925 = vmatpush1.bf16.msra.mxu0 %v896
        %926 = vmatprep.subr.bf16.mxu0 %v901
        %927 = vmatpush1.bf16.msra.mxu0 %v900
        %928 = vmatprep.subr.bf16.mxu0 %v905
        %929 = vmatpush1.bf16.msra.mxu0 %v904
        %930 = vmatprep.subr.bf16.mxu0 %v909
        %931 = vmatpush1.bf16.msra.mxu0 %v908
        %932 = vmatprep.subr.bf16.mxu0 %v913
        %933 = vmatpush1.bf16.msra.mxu0 %v912
        %934 = vmatprep.subr.bf16.mxu0 %v917
        %935 = vmatpush1.bf16.msra.mxu0 %v916
        %936 = vmatprep.subr.bf16.mxu0 0
        %937 = vmatpush1.bf16.msra.mxu0 0
        %938 = vmatprep.subr.bf16.mxu0 0
        %939 = vmatpush1.bf16.msra.mxu0 0
        %940 = vmatprep.subr.bf16.mxu0 0
        %941 = vmatpush1.bf16.msra.mxu0 0
        %942 = vmatprep.subr.bf16.mxu0 0
        %943 = vmatpush1.bf16.msra.mxu0 0
        %944 = vmatprep.subr.bf16.mxu0 0
        %945 = vmatpush1.bf16.msra.mxu0 0
        %946 = vmatprep.subr.bf16.mxu0 0
        %947 = vmatpush1.bf16.msra.mxu0 0
        %948 = vmatprep.subr.bf16.mxu0 0
        %949 = vmatpush1.bf16.msra.mxu0 0
        %950 = vmatprep.subr.bf16.mxu0 0
        %951 = vmatpush1.bf16.msra.mxu0 0
        %952 = vmatprep.mubr.bf16.mxu0 0
        %953 = vmatmul.mubr.bf16.gmra.mrb[0].mxu0 %v887
        %v954 = vpop.f32.mrb[0].mxu0
        %v955 = vadd.f32 0.0, %v954
        %v956 = vpop.f32.mrb[0].mxu0
        %v957 = vadd.f32 0.0, %v956
        %v958 = vpop.f32.mrb[0].mxu0
        %v959 = vpop.f32.mrb[0].mxu0
        %960 = vdwg.mxu0
        %961 = vmatprep.subr.bf16.mxu0 %v891
        %962 = vmatpush1.bf16.msra.mxu0 %v890
        %963 = vmatprep.subr.bf16.mxu0 %v895
        %964 = vmatpush1.bf16.msra.mxu0 %v894
        %965 = vmatprep.subr.bf16.mxu0 %v899
        %966 = vmatpush1.bf16.msra.mxu0 %v898
        %967 = vmatprep.subr.bf16.mxu0 %v903
        %968 = vmatpush1.bf16.msra.mxu0 %v902
        %969 = vmatprep.subr.bf16.mxu0 %v907
        %970 = vmatpush1.bf16.msra.mxu0 %v906
        %971 = vmatprep.subr.bf16.mxu0 %v911
        %972 = vmatpush1.bf16.msra.mxu0 %v910
        %973 = vmatprep.subr.bf16.mxu0 %v915
        %974 = vmatpush1.bf16.msra.mxu0 %v914
        %975 = vmatprep.subr.bf16.mxu0 %v919
        %976 = vmatpush1.bf16.msra.mxu0 %v918
        %977 = vmatprep.subr.bf16.mxu0 0
        %978 = vmatpush1.bf16.msra.mxu0 0
        %979 = vmatprep.subr.bf16.mxu0 0
        %980 = vmatpush1.bf16.msra.mxu0 0
        %981 = vmatprep.subr.bf16.mxu0 0
        %982 = vmatpush1.bf16.msra.mxu0 0
        %983 = vmatprep.subr.bf16.mxu0 0
        %984 = vmatpush1.bf16.msra.mxu0 0
        %985 = vmatprep.subr.bf16.mxu0 0
        %986 = vmatpush1.bf16.msra.mxu0 0
        %987 = vmatprep.subr.bf16.mxu0 0
        %988 = vmatpush1.bf16.msra.mxu0 0
        %989 = vmatprep.subr.bf16.mxu0 0
        %990 = vmatpush1.bf16.msra.mxu0 0
        %991 = vmatprep.subr.bf16.mxu0 0
        %992 = vmatpush1.bf16.msra.mxu0 0
        %993 = vmatprep.mubr.bf16.mxu0 0
        %994 = vmatmul.mubr.bf16.gmra.mrb[0].mxu0 %v887
        %v995 = vpop.f32.mrb[0].mxu0
        %v996 = vadd.f32 0.0, %v995
        %v997 = vpop.f32.mrb[0].mxu0
        %v998 = vadd.f32 0.0, %v997
        %v999 = vpop.f32.mrb[0].mxu0
        %v1000 = vpop.f32.mrb[0].mxu0
        %1001 = vdwg.mxu0
        %v1002 = vadd.f32 %v882, %v955
        %v1003 = vadd.f32 %v883, %v957
        %v1004 = vadd.f32 %v884, %v996
        %v1005 = vadd.f32 %v885, %v998
        %v1006 = vxor.u32 %v1002, 2147483648
        %v1007 = vmul.f32 %v1006, 1.442695
        %v1008 = vpow.pop %v1007
        %v1009 = vadd.f32 %v1008, 1.0
        %v1010 = vrcp.pop %v1009
        %v1011 = vmul.f32 1.0, %v1010
        %v1012 = vxor.u32 %v1003, 2147483648
        %v1013 = vmul.f32 %v1012, 1.442695
        %v1014 = vpow.pop %v1013
        %v1015 = vadd.f32 %v1014, 1.0
        %v1016 = vrcp.pop %v1015
        %v1017 = vmul.f32 1.0, %v1016
        %v1018 = vtanh.pop %v1004
        %v1019 = vxor.u32 %v1005, 2147483648
        %v1020 = vmul.f32 %v1019, 1.442695
        %v1021 = vpow.pop %v1020
        %v1022 = vadd.f32 %v1021, 1.0
        %v1023 = vrcp.pop %v1022
        %v1024 = vmul.f32 1.0, %v1023
        %v1025 = vld [vmem:[#allocation6] sm:$0xff]
        %v1026 = vmul.f32 %v1017, %v1025
        %v1027 = vmul.f32 %v1011, %v1018
        %v1028 = vadd.f32 %v1026, %v1027
        %v1029 = vtanh.pop %v1028
        %v1030 = vmul.f32 %v1024, %v1029
        %1031 = vst [vmem:[#allocation6] sm:$0xff] %v1028
        %1032 = vst [vmem:[#allocation5] sm:$0xff] %v1030
        %s1033 = sadd.s32 %s546, 2
        %v1034 = vstv %s1033
        %vm1035 = vcmp.gt.s32.totalorder %v545, %v1034
        %v1036 = vsel %vm1035, 1, 0
        %v1037 = vcvt.s32.f32 %v1036
        %1039 = vset.pattern.permute.xlu0 0
        %1040 = vperm.xlu0 %1039, %v1037
        %v1041 = vpop.permute.xlu0 %1040
        %v1043 = vmul.f32 %v1030, %v1041
        %s1044 = scalar_lea.vmem %s220, 16 [#allocation11]
        %1045 = vst [vmem:[%s1044] sm:$0xff] %v1043
        %s1046 = smul.u32 3, 4
        %s1047 = smul.addr %s1046, 8
        %s1048 = scalar_lea.vmem [#allocation7], %s1047
        %v1049 = vld [vmem:[%s1048] sm:$0xff]
        %v1050 = vld [vmem:[%s1048 + $0x8] sm:$0xff]
        %v1051 = vld [vmem:[%s1048 + $0x10] sm:$0xff]
        %v1052 = vld [vmem:[%s1048 + $0x18] sm:$0xff]
        %v1053 = vld [vmem:[#allocation5] sm:$0xff]
        %v1054 = vpack.c.bf16 %v1053, %v1053
        %v1055 = vld [vmem:[#allocation3] sm:$0xff]
        %v1056 = vld [vmem:[#allocation3 + $0x8] sm:$0xff]
        %v1057 = vld [vmem:[#allocation3 + $0x10] sm:$0xff]
        %v1058 = vld [vmem:[#allocation3 + $0x18] sm:$0xff]
        %v1059 = vld [vmem:[#allocation3 + $0x20] sm:$0xff]
        %v1060 = vld [vmem:[#allocation3 + $0x28] sm:$0xff]
        %v1061 = vld [vmem:[#allocation3 + $0x30] sm:$0xff]
        %v1062 = vld [vmem:[#allocation3 + $0x38] sm:$0xff]
        %v1063 = vld [vmem:[#allocation3 + $0x40] sm:$0xff]
        %v1064 = vld [vmem:[#allocation3 + $0x48] sm:$0xff]
        %v1065 = vld [vmem:[#allocation3 + $0x50] sm:$0xff]
        %v1066 = vld [vmem:[#allocation3 + $0x58] sm:$0xff]
        %v1067 = vld [vmem:[#allocation3 + $0x60] sm:$0xff]
        %v1068 = vld [vmem:[#allocation3 + $0x68] sm:$0xff]
        %v1069 = vld [vmem:[#allocation3 + $0x70] sm:$0xff]
        %v1070 = vld [vmem:[#allocation3 + $0x78] sm:$0xff]
        %v1071 = vld [vmem:[#allocation3 + $0x80] sm:$0xff]
        %v1072 = vld [vmem:[#allocation3 + $0x88] sm:$0xff]
        %v1073 = vld [vmem:[#allocation3 + $0x90] sm:$0xff]
        %v1074 = vld [vmem:[#allocation3 + $0x98] sm:$0xff]
        %v1075 = vld [vmem:[#allocation3 + $0xa0] sm:$0xff]
        %v1076 = vld [vmem:[#allocation3 + $0xa8] sm:$0xff]
        %v1077 = vld [vmem:[#allocation3 + $0xb0] sm:$0xff]
        %v1078 = vld [vmem:[#allocation3 + $0xb8] sm:$0xff]
        %v1079 = vld [vmem:[#allocation3 + $0xc0] sm:$0xff]
        %v1080 = vld [vmem:[#allocation3 + $0xc8] sm:$0xff]
        %v1081 = vld [vmem:[#allocation3 + $0xd0] sm:$0xff]
        %v1082 = vld [vmem:[#allocation3 + $0xd8] sm:$0xff]
        %v1083 = vld [vmem:[#allocation3 + $0xe0] sm:$0xff]
        %v1084 = vld [vmem:[#allocation3 + $0xe8] sm:$0xff]
        %v1085 = vld [vmem:[#allocation3 + $0xf0] sm:$0xff]
        %v1086 = vld [vmem:[#allocation3 + $0xf8] sm:$0xff]
        %1087 = vmatprep.subr.bf16.mxu0 %v1056
        %1088 = vmatpush1.bf16.msra.mxu0 %v1055
        %1089 = vmatprep.subr.bf16.mxu0 %v1060
        %1090 = vmatpush1.bf16.msra.mxu0 %v1059
        %1091 = vmatprep.subr.bf16.mxu0 %v1064
        %1092 = vmatpush1.bf16.msra.mxu0 %v1063
        %1093 = vmatprep.subr.bf16.mxu0 %v1068
        %1094 = vmatpush1.bf16.msra.mxu0 %v1067
        %1095 = vmatprep.subr.bf16.mxu0 %v1072
        %1096 = vmatpush1.bf16.msra.mxu0 %v1071
        %1097 = vmatprep.subr.bf16.mxu0 %v1076
        %1098 = vmatpush1.bf16.msra.mxu0 %v1075
        %1099 = vmatprep.subr.bf16.mxu0 %v1080
        %1100 = vmatpush1.bf16.msra.mxu0 %v1079
        %1101 = vmatprep.subr.bf16.mxu0 %v1084
        %1102 = vmatpush1.bf16.msra.mxu0 %v1083
        %1103 = vmatprep.subr.bf16.mxu0 0
        %1104 = vmatpush1.bf16.msra.mxu0 0
        %1105 = vmatprep.subr.bf16.mxu0 0
        %1106 = vmatpush1.bf16.msra.mxu0 0
        %1107 = vmatprep.subr.bf16.mxu0 0
        %1108 = vmatpush1.bf16.msra.mxu0 0
        %1109 = vmatprep.subr.bf16.mxu0 0
        %1110 = vmatpush1.bf16.msra.mxu0 0
        %1111 = vmatprep.subr.bf16.mxu0 0
        %1112 = vmatpush1.bf16.msra.mxu0 0
        %1113 = vmatprep.subr.bf16.mxu0 0
        %1114 = vmatpush1.bf16.msra.mxu0 0
        %1115 = vmatprep.subr.bf16.mxu0 0
        %1116 = vmatpush1.bf16.msra.mxu0 0
        %1117 = vmatprep.subr.bf16.mxu0 0
        %1118 = vmatpush1.bf16.msra.mxu0 0
        %1119 = vmatprep.mubr.bf16.mxu0 0
        %1120 = vmatmul.mubr.bf16.gmra.mrb[0].mxu0 %v1054
        %v1121 = vpop.f32.mrb[0].mxu0
        %v1122 = vadd.f32 0.0, %v1121
        %v1123 = vpop.f32.mrb[0].mxu0
        %v1124 = vadd.f32 0.0, %v1123
        %v1125 = vpop.f32.mrb[0].mxu0
        %v1126 = vpop.f32.mrb[0].mxu0
        %1127 = vdwg.mxu0
        %1128 = vmatprep.subr.bf16.mxu0 %v1058
        %1129 = vmatpush1.bf16.msra.mxu0 %v1057
        %1130 = vmatprep.subr.bf16.mxu0 %v1062
        %1131 = vmatpush1.bf16.msra.mxu0 %v1061
        %1132 = vmatprep.subr.bf16.mxu0 %v1066
        %1133 = vmatpush1.bf16.msra.mxu0 %v1065
        %1134 = vmatprep.subr.bf16.mxu0 %v1070
        %1135 = vmatpush1.bf16.msra.mxu0 %v1069
        %1136 = vmatprep.subr.bf16.mxu0 %v1074
        %1137 = vmatpush1.bf16.msra.mxu0 %v1073
        %1138 = vmatprep.subr.bf16.mxu0 %v1078
        %1139 = vmatpush1.bf16.msra.mxu0 %v1077
        %1140 = vmatprep.subr.bf16.mxu0 %v1082
        %1141 = vmatpush1.bf16.msra.mxu0 %v1081
        %1142 = vmatprep.subr.bf16.mxu0 %v1086
        %1143 = vmatpush1.bf16.msra.mxu0 %v1085
        %1144 = vmatprep.subr.bf16.mxu0 0
        %1145 = vmatpush1.bf16.msra.mxu0 0
        %1146 = vmatprep.subr.bf16.mxu0 0
        %1147 = vmatpush1.bf16.msra.mxu0 0
        %1148 = vmatprep.subr.bf16.mxu0 0
        %1149 = vmatpush1.bf16.msra.mxu0 0
        %1150 = vmatprep.subr.bf16.mxu0 0
        %1151 = vmatpush1.bf16.msra.mxu0 0
        %1152 = vmatprep.subr.bf16.mxu0 0
        %1153 = vmatpush1.bf16.msra.mxu0 0
        %1154 = vmatprep.subr.bf16.mxu0 0
        %1155 = vmatpush1.bf16.msra.mxu0 0
        %1156 = vmatprep.subr.bf16.mxu0 0
        %1157 = vmatpush1.bf16.msra.mxu0 0
        %1158 = vmatprep.subr.bf16.mxu0 0
        %1159 = vmatpush1.bf16.msra.mxu0 0
        %1160 = vmatprep.mubr.bf16.mxu0 0
        %1161 = vmatmul.mubr.bf16.gmra.mrb[0].mxu0 %v1054
        %v1162 = vpop.f32.mrb[0].mxu0
        %v1163 = vadd.f32 0.0, %v1162
        %v1164 = vpop.f32.mrb[0].mxu0
        %v1165 = vadd.f32 0.0, %v1164
        %v1166 = vpop.f32.mrb[0].mxu0
        %v1167 = vpop.f32.mrb[0].mxu0
        %1168 = vdwg.mxu0
        %v1169 = vadd.f32 %v1049, %v1122
        %v1170 = vadd.f32 %v1050, %v1124
        %v1171 = vadd.f32 %v1051, %v1163
        %v1172 = vadd.f32 %v1052, %v1165
        %v1173 = vxor.u32 %v1169, 2147483648
        %v1174 = vmul.f32 %v1173, 1.442695
        %v1175 = vpow.pop %v1174
        %v1176 = vadd.f32 %v1175, 1.0
        %v1177 = vrcp.pop %v1176
        %v1178 = vmul.f32 1.0, %v1177
        %v1179 = vxor.u32 %v1170, 2147483648
        %v1180 = vmul.f32 %v1179, 1.442695
        %v1181 = vpow.pop %v1180
        %v1182 = vadd.f32 %v1181, 1.0
        %v1183 = vrcp.pop %v1182
        %v1184 = vmul.f32 1.0, %v1183
        %v1185 = vtanh.pop %v1171
        %v1186 = vxor.u32 %v1172, 2147483648
        %v1187 = vmul.f32 %v1186, 1.442695
        %v1188 = vpow.pop %v1187
        %v1189 = vadd.f32 %v1188, 1.0
        %v1190 = vrcp.pop %v1189
        %v1191 = vmul.f32 1.0, %v1190
        %v1192 = vld [vmem:[#allocation6] sm:$0xff]
        %v1193 = vmul.f32 %v1184, %v1192
        %v1194 = vmul.f32 %v1178, %v1185
        %v1195 = vadd.f32 %v1193, %v1194
        %v1196 = vtanh.pop %v1195
        %v1197 = vmul.f32 %v1191, %v1196
        %1198 = vst [vmem:[#allocation6] sm:$0xff] %v1195
        %1199 = vst [vmem:[#allocation5] sm:$0xff] %v1197
        %s1200 = sadd.s32 %s546, 3
        %v1201 = vstv %s1200
        %vm1202 = vcmp.gt.s32.totalorder %v545, %v1201
        %v1203 = vsel %vm1202, 1, 0
        %v1204 = vcvt.s32.f32 %v1203
        %1206 = vset.pattern.permute.xlu0 0
        %1207 = vperm.xlu0 %1206, %v1204
        %v1208 = vpop.permute.xlu0 %1207
        %v1210 = vmul.f32 %v1197, %v1208
        %s1211 = scalar_lea.vmem %s220, 24 [#allocation11]
        %1212 = vst [vmem:[%s1211] sm:$0xff] %v1210
        %s1213 = smul.u32 4, 4
        %s1214 = smul.addr %s1213, 8
        %s1215 = scalar_lea.vmem [#allocation7], %s1214
        %v1216 = vld [vmem:[%s1215] sm:$0xff]
        %v1217 = vld [vmem:[%s1215 + $0x8] sm:$0xff]
        %v1218 = vld [vmem:[%s1215 + $0x10] sm:$0xff]
        %v1219 = vld [vmem:[%s1215 + $0x18] sm:$0xff]
        %v1220 = vld [vmem:[#allocation5] sm:$0xff]
        %v1221 = vpack.c.bf16 %v1220, %v1220
        %v1222 = vld [vmem:[#allocation3] sm:$0xff]
        %v1223 = vld [vmem:[#allocation3 + $0x8] sm:$0xff]
        %v1224 = vld [vmem:[#allocation3 + $0x10] sm:$0xff]
        %v1225 = vld [vmem:[#allocation3 + $0x18] sm:$0xff]
        %v1226 = vld [vmem:[#allocation3 + $0x20] sm:$0xff]
        %v1227 = vld [vmem:[#allocation3 + $0x28] sm:$0xff]
        %v1228 = vld [vmem:[#allocation3 + $0x30] sm:$0xff]
        %v1229 = vld [vmem:[#allocation3 + $0x38] sm:$0xff]
        %v1230 = vld [vmem:[#allocation3 + $0x40] sm:$0xff]
        %v1231 = vld [vmem:[#allocation3 + $0x48] sm:$0xff]
        %v1232 = vld [vmem:[#allocation3 + $0x50] sm:$0xff]
        %v1233 = vld [vmem:[#allocation3 + $0x58] sm:$0xff]
        %v1234 = vld [vmem:[#allocation3 + $0x60] sm:$0xff]
        %v1235 = vld [vmem:[#allocation3 + $0x68] sm:$0xff]
        %v1236 = vld [vmem:[#allocation3 + $0x70] sm:$0xff]
        %v1237 = vld [vmem:[#allocation3 + $0x78] sm:$0xff]
        %v1238 = vld [vmem:[#allocation3 + $0x80] sm:$0xff]
        %v1239 = vld [vmem:[#allocation3 + $0x88] sm:$0xff]
        %v1240 = vld [vmem:[#allocation3 + $0x90] sm:$0xff]
        %v1241 = vld [vmem:[#allocation3 + $0x98] sm:$0xff]
        %v1242 = vld [vmem:[#allocation3 + $0xa0] sm:$0xff]
        %v1243 = vld [vmem:[#allocation3 + $0xa8] sm:$0xff]
        %v1244 = vld [vmem:[#allocation3 + $0xb0] sm:$0xff]
        %v1245 = vld [vmem:[#allocation3 + $0xb8] sm:$0xff]
        %v1246 = vld [vmem:[#allocation3 + $0xc0] sm:$0xff]
        %v1247 = vld [vmem:[#allocation3 + $0xc8] sm:$0xff]
        %v1248 = vld [vmem:[#allocation3 + $0xd0] sm:$0xff]
        %v1249 = vld [vmem:[#allocation3 + $0xd8] sm:$0xff]
        %v1250 = vld [vmem:[#allocation3 + $0xe0] sm:$0xff]
        %v1251 = vld [vmem:[#allocation3 + $0xe8] sm:$0xff]
        %v1252 = vld [vmem:[#allocation3 + $0xf0] sm:$0xff]
        %v1253 = vld [vmem:[#allocation3 + $0xf8] sm:$0xff]
        %1254 = vmatprep.subr.bf16.mxu0 %v1223
        %1255 = vmatpush1.bf16.msra.mxu0 %v1222
        %1256 = vmatprep.subr.bf16.mxu0 %v1227
        %1257 = vmatpush1.bf16.msra.mxu0 %v1226
        %1258 = vmatprep.subr.bf16.mxu0 %v1231
        %1259 = vmatpush1.bf16.msra.mxu0 %v1230
        %1260 = vmatprep.subr.bf16.mxu0 %v1235
        %1261 = vmatpush1.bf16.msra.mxu0 %v1234
        %1262 = vmatprep.subr.bf16.mxu0 %v1239
        %1263 = vmatpush1.bf16.msra.mxu0 %v1238
        %1264 = vmatprep.subr.bf16.mxu0 %v1243
        %1265 = vmatpush1.bf16.msra.mxu0 %v1242
        %1266 = vmatprep.subr.bf16.mxu0 %v1247
        %1267 = vmatpush1.bf16.msra.mxu0 %v1246
        %1268 = vmatprep.subr.bf16.mxu0 %v1251
        %1269 = vmatpush1.bf16.msra.mxu0 %v1250
        %1270 = vmatprep.subr.bf16.mxu0 0
        %1271 = vmatpush1.bf16.msra.mxu0 0
        %1272 = vmatprep.subr.bf16.mxu0 0
        %1273 = vmatpush1.bf16.msra.mxu0 0
        %1274 = vmatprep.subr.bf16.mxu0 0
        %1275 = vmatpush1.bf16.msra.mxu0 0
        %1276 = vmatprep.subr.bf16.mxu0 0
        %1277 = vmatpush1.bf16.msra.mxu0 0
        %1278 = vmatprep.subr.bf16.mxu0 0
        %1279 = vmatpush1.bf16.msra.mxu0 0
        %1280 = vmatprep.subr.bf16.mxu0 0
        %1281 = vmatpush1.bf16.msra.mxu0 0
        %1282 = vmatprep.subr.bf16.mxu0 0
        %1283 = vmatpush1.bf16.msra.mxu0 0
        %1284 = vmatprep.subr.bf16.mxu0 0
        %1285 = vmatpush1.bf16.msra.mxu0 0
        %1286 = vmatprep.mubr.bf16.mxu0 0
        %1287 = vmatmul.mubr.bf16.gmra.mrb[0].mxu0 %v1221
        %v1288 = vpop.f32.mrb[0].mxu0
        %v1289 = vadd.f32 0.0, %v1288
        %v1290 = vpop.f32.mrb[0].mxu0
        %v1291 = vadd.f32 0.0, %v1290
        %v1292 = vpop.f32.mrb[0].mxu0
        %v1293 = vpop.f32.mrb[0].mxu0
        %1294 = vdwg.mxu0
        %1295 = vmatprep.subr.bf16.mxu0 %v1225
        %1296 = vmatpush1.bf16.msra.mxu0 %v1224
        %1297 = vmatprep.subr.bf16.mxu0 %v1229
        %1298 = vmatpush1.bf16.msra.mxu0 %v1228
        %1299 = vmatprep.subr.bf16.mxu0 %v1233
        %1300 = vmatpush1.bf16.msra.mxu0 %v1232
        %1301 = vmatprep.subr.bf16.mxu0 %v1237
        %1302 = vmatpush1.bf16.msra.mxu0 %v1236
        %1303 = vmatprep.subr.bf16.mxu0 %v1241
        %1304 = vmatpush1.bf16.msra.mxu0 %v1240
        %1305 = vmatprep.subr.bf16.mxu0 %v1245
        %1306 = vmatpush1.bf16.msra.mxu0 %v1244
        %1307 = vmatprep.subr.bf16.mxu0 %v1249
        %1308 = vmatpush1.bf16.msra.mxu0 %v1248
        %1309 = vmatprep.subr.bf16.mxu0 %v1253
        %1310 = vmatpush1.bf16.msra.mxu0 %v1252
        %1311 = vmatprep.subr.bf16.mxu0 0
        %1312 = vmatpush1.bf16.msra.mxu0 0
        %1313 = vmatprep.subr.bf16.mxu0 0
        %1314 = vmatpush1.bf16.msra.mxu0 0
        %1315 = vmatprep.subr.bf16.mxu0 0
        %1316 = vmatpush1.bf16.msra.mxu0 0
        %1317 = vmatprep.subr.bf16.mxu0 0
        %1318 = vmatpush1.bf16.msra.mxu0 0
        %1319 = vmatprep.subr.bf16.mxu0 0
        %1320 = vmatpush1.bf16.msra.mxu0 0
        %1321 = vmatprep.subr.bf16.mxu0 0
        %1322 = vmatpush1.bf16.msra.mxu0 0
        %1323 = vmatprep.subr.bf16.mxu0 0
        %1324 = vmatpush1.bf16.msra.mxu0 0
        %1325 = vmatprep.subr.bf16.mxu0 0
        %1326 = vmatpush1.bf16.msra.mxu0 0
        %1327 = vmatprep.mubr.bf16.mxu0 0
        %1328 = vmatmul.mubr.bf16.gmra.mrb[0].mxu0 %v1221
        %v1329 = vpop.f32.mrb[0].mxu0
        %v1330 = vadd.f32 0.0, %v1329
        %v1331 = vpop.f32.mrb[0].mxu0
        %v1332 = vadd.f32 0.0, %v1331
        %v1333 = vpop.f32.mrb[0].mxu0
        %v1334 = vpop.f32.mrb[0].mxu0
        %1335 = vdwg.mxu0
        %v1336 = vadd.f32 %v1216, %v1289
        %v1337 = vadd.f32 %v1217, %v1291
        %v1338 = vadd.f32 %v1218, %v1330
        %v1339 = vadd.f32 %v1219, %v1332
        %v1340 = vxor.u32 %v1336, 2147483648
        %v1341 = vmul.f32 %v1340, 1.442695
        %v1342 = vpow.pop %v1341
        %v1343 = vadd.f32 %v1342, 1.0
        %v1344 = vrcp.pop %v1343
        %v1345 = vmul.f32 1.0, %v1344
        %v1346 = vxor.u32 %v1337, 2147483648
        %v1347 = vmul.f32 %v1346, 1.442695
        %v1348 = vpow.pop %v1347
        %v1349 = vadd.f32 %v1348, 1.0
        %v1350 = vrcp.pop %v1349
        %v1351 = vmul.f32 1.0, %v1350
        %v1352 = vtanh.pop %v1338
        %v1353 = vxor.u32 %v1339, 2147483648
        %v1354 = vmul.f32 %v1353, 1.442695
        %v1355 = vpow.pop %v1354
        %v1356 = vadd.f32 %v1355, 1.0
        %v1357 = vrcp.pop %v1356
        %v1358 = vmul.f32 1.0, %v1357
        %v1359 = vld [vmem:[#allocation6] sm:$0xff]
        %v1360 = vmul.f32 %v1351, %v1359
        %v1361 = vmul.f32 %v1345, %v1352
        %v1362 = vadd.f32 %v1360, %v1361
        %v1363 = vtanh.pop %v1362
        %v1364 = vmul.f32 %v1358, %v1363
        %1365 = vst [vmem:[#allocation6] sm:$0xff] %v1362
        %1366 = vst [vmem:[#allocation5] sm:$0xff] %v1364
        %s1367 = sadd.s32 %s546, 4
        %v1368 = vstv %s1367
        %vm1369 = vcmp.gt.s32.totalorder %v545, %v1368
        %v1370 = vsel %vm1369, 1, 0
        %v1371 = vcvt.s32.f32 %v1370
        %1373 = vset.pattern.permute.xlu0 0
        %1374 = vperm.xlu0 %1373, %v1371
        %v1375 = vpop.permute.xlu0 %1374
        %v1377 = vmul.f32 %v1364, %v1375
        %s1378 = scalar_lea.vmem %s220, 32 [#allocation11]
        %1379 = vst [vmem:[%s1378] sm:$0xff] %v1377
        %s1380 = smul.u32 5, 4
        %s1381 = smul.addr %s1380, 8
        %s1382 = scalar_lea.vmem [#allocation7], %s1381
        %v1383 = vld [vmem:[%s1382] sm:$0xff]
        %v1384 = vld [vmem:[%s1382 + $0x8] sm:$0xff]
        %v1385 = vld [vmem:[%s1382 + $0x10] sm:$0xff]
        %v1386 = vld [vmem:[%s1382 + $0x18] sm:$0xff]
        %v1387 = vld [vmem:[#allocation5] sm:$0xff]
        %v1388 = vpack.c.bf16 %v1387, %v1387
        %v1389 = vld [vmem:[#allocation3] sm:$0xff]
        %v1390 = vld [vmem:[#allocation3 + $0x8] sm:$0xff]
        %v1391 = vld [vmem:[#allocation3 + $0x10] sm:$0xff]
        %v1392 = vld [vmem:[#allocation3 + $0x18] sm:$0xff]
        %v1393 = vld [vmem:[#allocation3 + $0x20] sm:$0xff]
        %v1394 = vld [vmem:[#allocation3 + $0x28] sm:$0xff]
        %v1395 = vld [vmem:[#allocation3 + $0x30] sm:$0xff]
        %v1396 = vld [vmem:[#allocation3 + $0x38] sm:$0xff]
        %v1397 = vld [vmem:[#allocation3 + $0x40] sm:$0xff]
        %v1398 = vld [vmem:[#allocation3 + $0x48] sm:$0xff]
        %v1399 = vld [vmem:[#allocation3 + $0x50] sm:$0xff]
        %v1400 = vld [vmem:[#allocation3 + $0x58] sm:$0xff]
        %v1401 = vld [vmem:[#allocation3 + $0x60] sm:$0xff]
        %v1402 = vld [vmem:[#allocation3 + $0x68] sm:$0xff]
        %v1403 = vld [vmem:[#allocation3 + $0x70] sm:$0xff]
        %v1404 = vld [vmem:[#allocation3 + $0x78] sm:$0xff]
        %v1405 = vld [vmem:[#allocation3 + $0x80] sm:$0xff]
        %v1406 = vld [vmem:[#allocation3 + $0x88] sm:$0xff]
        %v1407 = vld [vmem:[#allocation3 + $0x90] sm:$0xff]
        %v1408 = vld [vmem:[#allocation3 + $0x98] sm:$0xff]
        %v1409 = vld [vmem:[#allocation3 + $0xa0] sm:$0xff]
        %v1410 = vld [vmem:[#allocation3 + $0xa8] sm:$0xff]
        %v1411 = vld [vmem:[#allocation3 + $0xb0] sm:$0xff]
        %v1412 = vld [vmem:[#allocation3 + $0xb8] sm:$0xff]
        %v1413 = vld [vmem:[#allocation3 + $0xc0] sm:$0xff]
        %v1414 = vld [vmem:[#allocation3 + $0xc8] sm:$0xff]
        %v1415 = vld [vmem:[#allocation3 + $0xd0] sm:$0xff]
        %v1416 = vld [vmem:[#allocation3 + $0xd8] sm:$0xff]
        %v1417 = vld [vmem:[#allocation3 + $0xe0] sm:$0xff]
        %v1418 = vld [vmem:[#allocation3 + $0xe8] sm:$0xff]
        %v1419 = vld [vmem:[#allocation3 + $0xf0] sm:$0xff]
        %v1420 = vld [vmem:[#allocation3 + $0xf8] sm:$0xff]
        %1421 = vmatprep.subr.bf16.mxu0 %v1390
        %1422 = vmatpush1.bf16.msra.mxu0 %v1389
        %1423 = vmatprep.subr.bf16.mxu0 %v1394
        %1424 = vmatpush1.bf16.msra.mxu0 %v1393
        %1425 = vmatprep.subr.bf16.mxu0 %v1398
        %1426 = vmatpush1.bf16.msra.mxu0 %v1397
        %1427 = vmatprep.subr.bf16.mxu0 %v1402
        %1428 = vmatpush1.bf16.msra.mxu0 %v1401
        %1429 = vmatprep.subr.bf16.mxu0 %v1406
        %1430 = vmatpush1.bf16.msra.mxu0 %v1405
        %1431 = vmatprep.subr.bf16.mxu0 %v1410
        %1432 = vmatpush1.bf16.msra.mxu0 %v1409
        %1433 = vmatprep.subr.bf16.mxu0 %v1414
        %1434 = vmatpush1.bf16.msra.mxu0 %v1413
        %1435 = vmatprep.subr.bf16.mxu0 %v1418
        %1436 = vmatpush1.bf16.msra.mxu0 %v1417
        %1437 = vmatprep.subr.bf16.mxu0 0
        %1438 = vmatpush1.bf16.msra.mxu0 0
        %1439 = vmatprep.subr.bf16.mxu0 0
        %1440 = vmatpush1.bf16.msra.mxu0 0
        %1441 = vmatprep.subr.bf16.mxu0 0
        %1442 = vmatpush1.bf16.msra.mxu0 0
        %1443 = vmatprep.subr.bf16.mxu0 0
        %1444 = vmatpush1.bf16.msra.mxu0 0
        %1445 = vmatprep.subr.bf16.mxu0 0
        %1446 = vmatpush1.bf16.msra.mxu0 0
        %1447 = vmatprep.subr.bf16.mxu0 0
        %1448 = vmatpush1.bf16.msra.mxu0 0
        %1449 = vmatprep.subr.bf16.mxu0 0
        %1450 = vmatpush1.bf16.msra.mxu0 0
        %1451 = vmatprep.subr.bf16.mxu0 0
        %1452 = vmatpush1.bf16.msra.mxu0 0
        %1453 = vmatprep.mubr.bf16.mxu0 0
        %1454 = vmatmul.mubr.bf16.gmra.mrb[0].mxu0 %v1388
        %v1455 = vpop.f32.mrb[0].mxu0
        %v1456 = vadd.f32 0.0, %v1455
        %v1457 = vpop.f32.mrb[0].mxu0
        %v1458 = vadd.f32 0.0, %v1457
        %v1459 = vpop.f32.mrb[0].mxu0
        %v1460 = vpop.f32.mrb[0].mxu0
        %1461 = vdwg.mxu0
        %1462 = vmatprep.subr.bf16.mxu0 %v1392
        %1463 = vmatpush1.bf16.msra.mxu0 %v1391
        %1464 = vmatprep.subr.bf16.mxu0 %v1396
        %1465 = vmatpush1.bf16.msra.mxu0 %v1395
        %1466 = vmatprep.subr.bf16.mxu0 %v1400
        %1467 = vmatpush1.bf16.msra.mxu0 %v1399
        %1468 = vmatprep.subr.bf16.mxu0 %v1404
        %1469 = vmatpush1.bf16.msra.mxu0 %v1403
        %1470 = vmatprep.subr.bf16.mxu0 %v1408
        %1471 = vmatpush1.bf16.msra.mxu0 %v1407
        %1472 = vmatprep.subr.bf16.mxu0 %v1412
        %1473 = vmatpush1.bf16.msra.mxu0 %v1411
        %1474 = vmatprep.subr.bf16.mxu0 %v1416
        %1475 = vmatpush1.bf16.msra.mxu0 %v1415
        %1476 = vmatprep.subr.bf16.mxu0 %v1420
        %1477 = vmatpush1.bf16.msra.mxu0 %v1419
        %1478 = vmatprep.subr.bf16.mxu0 0
        %1479 = vmatpush1.bf16.msra.mxu0 0
        %1480 = vmatprep.subr.bf16.mxu0 0
        %1481 = vmatpush1.bf16.msra.mxu0 0
        %1482 = vmatprep.subr.bf16.mxu0 0
        %1483 = vmatpush1.bf16.msra.mxu0 0
        %1484 = vmatprep.subr.bf16.mxu0 0
        %1485 = vmatpush1.bf16.msra.mxu0 0
        %1486 = vmatprep.subr.bf16.mxu0 0
        %1487 = vmatpush1.bf16.msra.mxu0 0
        %1488 = vmatprep.subr.bf16.mxu0 0
        %1489 = vmatpush1.bf16.msra.mxu0 0
        %1490 = vmatprep.subr.bf16.mxu0 0
        %1491 = vmatpush1.bf16.msra.mxu0 0
        %1492 = vmatprep.subr.bf16.mxu0 0
        %1493 = vmatpush1.bf16.msra.mxu0 0
        %1494 = vmatprep.mubr.bf16.mxu0 0
        %1495 = vmatmul.mubr.bf16.gmra.mrb[0].mxu0 %v1388
        %v1496 = vpop.f32.mrb[0].mxu0
        %v1497 = vadd.f32 0.0, %v1496
        %v1498 = vpop.f32.mrb[0].mxu0
        %v1499 = vadd.f32 0.0, %v1498
        %v1500 = vpop.f32.mrb[0].mxu0
        %v1501 = vpop.f32.mrb[0].mxu0
        %1502 = vdwg.mxu0
        %v1503 = vadd.f32 %v1383, %v1456
        %v1504 = vadd.f32 %v1384, %v1458
        %v1505 = vadd.f32 %v1385, %v1497
        %v1506 = vadd.f32 %v1386, %v1499
        %v1507 = vxor.u32 %v1503, 2147483648
        %v1508 = vmul.f32 %v1507, 1.442695
        %v1509 = vpow.pop %v1508
        %v1510 = vadd.f32 %v1509, 1.0
        %v1511 = vrcp.pop %v1510
        %v1512 = vmul.f32 1.0, %v1511
        %v1513 = vxor.u32 %v1504, 2147483648
        %v1514 = vmul.f32 %v1513, 1.442695
        %v1515 = vpow.pop %v1514
        %v1516 = vadd.f32 %v1515, 1.0
        %v1517 = vrcp.pop %v1516
        %v1518 = vmul.f32 1.0, %v1517
        %v1519 = vtanh.pop %v1505
        %v1520 = vxor.u32 %v1506, 2147483648
        %v1521 = vmul.f32 %v1520, 1.442695
        %v1522 = vpow.pop %v1521
        %v1523 = vadd.f32 %v1522, 1.0
        %v1524 = vrcp.pop %v1523
        %v1525 = vmul.f32 1.0, %v1524
        %v1526 = vld [vmem:[#allocation6] sm:$0xff]
        %v1527 = vmul.f32 %v1518, %v1526
        %v1528 = vmul.f32 %v1512, %v1519
        %v1529 = vadd.f32 %v1527, %v1528
        %v1530 = vtanh.pop %v1529
        %v1531 = vmul.f32 %v1525, %v1530
        %1532 = vst [vmem:[#allocation6] sm:$0xff] %v1529
        %1533 = vst [vmem:[#allocation5] sm:$0xff] %v1531
        %s1534 = sadd.s32 %s546, 5
        %v1535 = vstv %s1534
        %vm1536 = vcmp.gt.s32.totalorder %v545, %v1535
        %v1537 = vsel %vm1536, 1, 0
        %v1538 = vcvt.s32.f32 %v1537
        %1540 = vset.pattern.permute.xlu0 0
        %1541 = vperm.xlu0 %1540, %v1538
        %v1542 = vpop.permute.xlu0 %1541
        %v1544 = vmul.f32 %v1531, %v1542
        %s1545 = scalar_lea.vmem %s220, 40 [#allocation11]
        %1546 = vst [vmem:[%s1545] sm:$0xff] %v1544
        %s1547 = smul.u32 6, 4
        %s1548 = smul.addr %s1547, 8
        %s1549 = scalar_lea.vmem [#allocation7], %s1548
        %v1550 = vld [vmem:[%s1549] sm:$0xff]
        %v1551 = vld [vmem:[%s1549 + $0x8] sm:$0xff]
        %v1552 = vld [vmem:[%s1549 + $0x10] sm:$0xff]
        %v1553 = vld [vmem:[%s1549 + $0x18] sm:$0xff]
        %v1554 = vld [vmem:[#allocation5] sm:$0xff]
        %v1555 = vpack.c.bf16 %v1554, %v1554
        %v1556 = vld [vmem:[#allocation3] sm:$0xff]
        %v1557 = vld [vmem:[#allocation3 + $0x8] sm:$0xff]
        %v1558 = vld [vmem:[#allocation3 + $0x10] sm:$0xff]
        %v1559 = vld [vmem:[#allocation3 + $0x18] sm:$0xff]
        %v1560 = vld [vmem:[#allocation3 + $0x20] sm:$0xff]
        %v1561 = vld [vmem:[#allocation3 + $0x28] sm:$0xff]
        %v1562 = vld [vmem:[#allocation3 + $0x30] sm:$0xff]
        %v1563 = vld [vmem:[#allocation3 + $0x38] sm:$0xff]
        %v1564 = vld [vmem:[#allocation3 + $0x40] sm:$0xff]
        %v1565 = vld [vmem:[#allocation3 + $0x48] sm:$0xff]
        %v1566 = vld [vmem:[#allocation3 + $0x50] sm:$0xff]
        %v1567 = vld [vmem:[#allocation3 + $0x58] sm:$0xff]
        %v1568 = vld [vmem:[#allocation3 + $0x60] sm:$0xff]
        %v1569 = vld [vmem:[#allocation3 + $0x68] sm:$0xff]
        %v1570 = vld [vmem:[#allocation3 + $0x70] sm:$0xff]
        %v1571 = vld [vmem:[#allocation3 + $0x78] sm:$0xff]
        %v1572 = vld [vmem:[#allocation3 + $0x80] sm:$0xff]
        %v1573 = vld [vmem:[#allocation3 + $0x88] sm:$0xff]
        %v1574 = vld [vmem:[#allocation3 + $0x90] sm:$0xff]
        %v1575 = vld [vmem:[#allocation3 + $0x98] sm:$0xff]
        %v1576 = vld [vmem:[#allocation3 + $0xa0] sm:$0xff]
        %v1577 = vld [vmem:[#allocation3 + $0xa8] sm:$0xff]
        %v1578 = vld [vmem:[#allocation3 + $0xb0] sm:$0xff]
        %v1579 = vld [vmem:[#allocation3 + $0xb8] sm:$0xff]
        %v1580 = vld [vmem:[#allocation3 + $0xc0] sm:$0xff]
        %v1581 = vld [vmem:[#allocation3 + $0xc8] sm:$0xff]
        %v1582 = vld [vmem:[#allocation3 + $0xd0] sm:$0xff]
        %v1583 = vld [vmem:[#allocation3 + $0xd8] sm:$0xff]
        %v1584 = vld [vmem:[#allocation3 + $0xe0] sm:$0xff]
        %v1585 = vld [vmem:[#allocation3 + $0xe8] sm:$0xff]
        %v1586 = vld [vmem:[#allocation3 + $0xf0] sm:$0xff]
        %v1587 = vld [vmem:[#allocation3 + $0xf8] sm:$0xff]
        %1588 = vmatprep.subr.bf16.mxu0 %v1557
        %1589 = vmatpush1.bf16.msra.mxu0 %v1556
        %1590 = vmatprep.subr.bf16.mxu0 %v1561
        %1591 = vmatpush1.bf16.msra.mxu0 %v1560
        %1592 = vmatprep.subr.bf16.mxu0 %v1565
        %1593 = vmatpush1.bf16.msra.mxu0 %v1564
        %1594 = vmatprep.subr.bf16.mxu0 %v1569
        %1595 = vmatpush1.bf16.msra.mxu0 %v1568
        %1596 = vmatprep.subr.bf16.mxu0 %v1573
        %1597 = vmatpush1.bf16.msra.mxu0 %v1572
        %1598 = vmatprep.subr.bf16.mxu0 %v1577
        %1599 = vmatpush1.bf16.msra.mxu0 %v1576
        %1600 = vmatprep.subr.bf16.mxu0 %v1581
        %1601 = vmatpush1.bf16.msra.mxu0 %v1580
        %1602 = vmatprep.subr.bf16.mxu0 %v1585
        %1603 = vmatpush1.bf16.msra.mxu0 %v1584
        %1604 = vmatprep.subr.bf16.mxu0 0
        %1605 = vmatpush1.bf16.msra.mxu0 0
        %1606 = vmatprep.subr.bf16.mxu0 0
        %1607 = vmatpush1.bf16.msra.mxu0 0
        %1608 = vmatprep.subr.bf16.mxu0 0
        %1609 = vmatpush1.bf16.msra.mxu0 0
        %1610 = vmatprep.subr.bf16.mxu0 0
        %1611 = vmatpush1.bf16.msra.mxu0 0
        %1612 = vmatprep.subr.bf16.mxu0 0
        %1613 = vmatpush1.bf16.msra.mxu0 0
        %1614 = vmatprep.subr.bf16.mxu0 0
        %1615 = vmatpush1.bf16.msra.mxu0 0
        %1616 = vmatprep.subr.bf16.mxu0 0
        %1617 = vmatpush1.bf16.msra.mxu0 0
        %1618 = vmatprep.subr.bf16.mxu0 0
        %1619 = vmatpush1.bf16.msra.mxu0 0
        %1620 = vmatprep.mubr.bf16.mxu0 0
        %1621 = vmatmul.mubr.bf16.gmra.mrb[0].mxu0 %v1555
        %v1622 = vpop.f32.mrb[0].mxu0
        %v1623 = vadd.f32 0.0, %v1622
        %v1624 = vpop.f32.mrb[0].mxu0
        %v1625 = vadd.f32 0.0, %v1624
        %v1626 = vpop.f32.mrb[0].mxu0
        %v1627 = vpop.f32.mrb[0].mxu0
        %1628 = vdwg.mxu0
        %1629 = vmatprep.subr.bf16.mxu0 %v1559
        %1630 = vmatpush1.bf16.msra.mxu0 %v1558
        %1631 = vmatprep.subr.bf16.mxu0 %v1563
        %1632 = vmatpush1.bf16.msra.mxu0 %v1562
        %1633 = vmatprep.subr.bf16.mxu0 %v1567
        %1634 = vmatpush1.bf16.msra.mxu0 %v1566
        %1635 = vmatprep.subr.bf16.mxu0 %v1571
        %1636 = vmatpush1.bf16.msra.mxu0 %v1570
        %1637 = vmatprep.subr.bf16.mxu0 %v1575
        %1638 = vmatpush1.bf16.msra.mxu0 %v1574
        %1639 = vmatprep.subr.bf16.mxu0 %v1579
        %1640 = vmatpush1.bf16.msra.mxu0 %v1578
        %1641 = vmatprep.subr.bf16.mxu0 %v1583
        %1642 = vmatpush1.bf16.msra.mxu0 %v1582
        %1643 = vmatprep.subr.bf16.mxu0 %v1587
        %1644 = vmatpush1.bf16.msra.mxu0 %v1586
        %1645 = vmatprep.subr.bf16.mxu0 0
        %1646 = vmatpush1.bf16.msra.mxu0 0
        %1647 = vmatprep.subr.bf16.mxu0 0
        %1648 = vmatpush1.bf16.msra.mxu0 0
        %1649 = vmatprep.subr.bf16.mxu0 0
        %1650 = vmatpush1.bf16.msra.mxu0 0
        %1651 = vmatprep.subr.bf16.mxu0 0
        %1652 = vmatpush1.bf16.msra.mxu0 0
        %1653 = vmatprep.subr.bf16.mxu0 0
        %1654 = vmatpush1.bf16.msra.mxu0 0
        %1655 = vmatprep.subr.bf16.mxu0 0
        %1656 = vmatpush1.bf16.msra.mxu0 0
        %1657 = vmatprep.subr.bf16.mxu0 0
        %1658 = vmatpush1.bf16.msra.mxu0 0
        %1659 = vmatprep.subr.bf16.mxu0 0
        %1660 = vmatpush1.bf16.msra.mxu0 0
        %1661 = vmatprep.mubr.bf16.mxu0 0
        %1662 = vmatmul.mubr.bf16.gmra.mrb[0].mxu0 %v1555
        %v1663 = vpop.f32.mrb[0].mxu0
        %v1664 = vadd.f32 0.0, %v1663
        %v1665 = vpop.f32.mrb[0].mxu0
        %v1666 = vadd.f32 0.0, %v1665
        %v1667 = vpop.f32.mrb[0].mxu0
        %v1668 = vpop.f32.mrb[0].mxu0
        %1669 = vdwg.mxu0
        %v1670 = vadd.f32 %v1550, %v1623
        %v1671 = vadd.f32 %v1551, %v1625
        %v1672 = vadd.f32 %v1552, %v1664
        %v1673 = vadd.f32 %v1553, %v1666
        %v1674 = vxor.u32 %v1670, 2147483648
        %v1675 = vmul.f32 %v1674, 1.442695
        %v1676 = vpow.pop %v1675
        %v1677 = vadd.f32 %v1676, 1.0
        %v1678 = vrcp.pop %v1677
        %v1679 = vmul.f32 1.0, %v1678
        %v1680 = vxor.u32 %v1671, 2147483648
        %v1681 = vmul.f32 %v1680, 1.442695
        %v1682 = vpow.pop %v1681
        %v1683 = vadd.f32 %v1682, 1.0
        %v1684 = vrcp.pop %v1683
        %v1685 = vmul.f32 1.0, %v1684
        %v1686 = vtanh.pop %v1672
        %v1687 = vxor.u32 %v1673, 2147483648
        %v1688 = vmul.f32 %v1687, 1.442695
        %v1689 = vpow.pop %v1688
        %v1690 = vadd.f32 %v1689, 1.0
        %v1691 = vrcp.pop %v1690
        %v1692 = vmul.f32 1.0, %v1691
        %v1693 = vld [vmem:[#allocation6] sm:$0xff]
        %v1694 = vmul.f32 %v1685, %v1693
        %v1695 = vmul.f32 %v1679, %v1686
        %v1696 = vadd.f32 %v1694, %v1695
        %v1697 = vtanh.pop %v1696
        %v1698 = vmul.f32 %v1692, %v1697
        %1699 = vst [vmem:[#allocation6] sm:$0xff] %v1696
        %1700 = vst [vmem:[#allocation5] sm:$0xff] %v1698
        %s1701 = sadd.s32 %s546, 6
        %v1702 = vstv %s1701
        %vm1703 = vcmp.gt.s32.totalorder %v545, %v1702
        %v1704 = vsel %vm1703, 1, 0
        %v1705 = vcvt.s32.f32 %v1704
        %1707 = vset.pattern.permute.xlu0 0
        %1708 = vperm.xlu0 %1707, %v1705
        %v1709 = vpop.permute.xlu0 %1708
        %v1711 = vmul.f32 %v1698, %v1709
        %s1712 = scalar_lea.vmem %s220, 48 [#allocation11]
        %1713 = vst [vmem:[%s1712] sm:$0xff] %v1711
        %s1714 = smul.u32 7, 4
        %s1715 = smul.addr %s1714, 8
        %s1716 = scalar_lea.vmem [#allocation7], %s1715
        %v1717 = vld [vmem:[%s1716] sm:$0xff]
        %v1718 = vld [vmem:[%s1716 + $0x8] sm:$0xff]
        %v1719 = vld [vmem:[%s1716 + $0x10] sm:$0xff]
        %v1720 = vld [vmem:[%s1716 + $0x18] sm:$0xff]
        %v1721 = vld [vmem:[#allocation5] sm:$0xff]
        %v1722 = vpack.c.bf16 %v1721, %v1721
        %v1723 = vld [vmem:[#allocation3] sm:$0xff]
        %v1724 = vld [vmem:[#allocation3 + $0x8] sm:$0xff]
        %v1725 = vld [vmem:[#allocation3 + $0x10] sm:$0xff]
        %v1726 = vld [vmem:[#allocation3 + $0x18] sm:$0xff]
        %v1727 = vld [vmem:[#allocation3 + $0x20] sm:$0xff]
        %v1728 = vld [vmem:[#allocation3 + $0x28] sm:$0xff]
        %v1729 = vld [vmem:[#allocation3 + $0x30] sm:$0xff]
        %v1730 = vld [vmem:[#allocation3 + $0x38] sm:$0xff]
        %v1731 = vld [vmem:[#allocation3 + $0x40] sm:$0xff]
        %v1732 = vld [vmem:[#allocation3 + $0x48] sm:$0xff]
        %v1733 = vld [vmem:[#allocation3 + $0x50] sm:$0xff]
        %v1734 = vld [vmem:[#allocation3 + $0x58] sm:$0xff]
        %v1735 = vld [vmem:[#allocation3 + $0x60] sm:$0xff]
        %v1736 = vld [vmem:[#allocation3 + $0x68] sm:$0xff]
        %v1737 = vld [vmem:[#allocation3 + $0x70] sm:$0xff]
        %v1738 = vld [vmem:[#allocation3 + $0x78] sm:$0xff]
        %v1739 = vld [vmem:[#allocation3 + $0x80] sm:$0xff]
        %v1740 = vld [vmem:[#allocation3 + $0x88] sm:$0xff]
        %v1741 = vld [vmem:[#allocation3 + $0x90] sm:$0xff]
        %v1742 = vld [vmem:[#allocation3 + $0x98] sm:$0xff]
        %v1743 = vld [vmem:[#allocation3 + $0xa0] sm:$0xff]
        %v1744 = vld [vmem:[#allocation3 + $0xa8] sm:$0xff]
        %v1745 = vld [vmem:[#allocation3 + $0xb0] sm:$0xff]
        %v1746 = vld [vmem:[#allocation3 + $0xb8] sm:$0xff]
        %v1747 = vld [vmem:[#allocation3 + $0xc0] sm:$0xff]
        %v1748 = vld [vmem:[#allocation3 + $0xc8] sm:$0xff]
        %v1749 = vld [vmem:[#allocation3 + $0xd0] sm:$0xff]
        %v1750 = vld [vmem:[#allocation3 + $0xd8] sm:$0xff]
        %v1751 = vld [vmem:[#allocation3 + $0xe0] sm:$0xff]
        %v1752 = vld [vmem:[#allocation3 + $0xe8] sm:$0xff]
        %v1753 = vld [vmem:[#allocation3 + $0xf0] sm:$0xff]
        %v1754 = vld [vmem:[#allocation3 + $0xf8] sm:$0xff]
        %1755 = vmatprep.subr.bf16.mxu0 %v1724
        %1756 = vmatpush1.bf16.msra.mxu0 %v1723
        %1757 = vmatprep.subr.bf16.mxu0 %v1728
        %1758 = vmatpush1.bf16.msra.mxu0 %v1727
        %1759 = vmatprep.subr.bf16.mxu0 %v1732
        %1760 = vmatpush1.bf16.msra.mxu0 %v1731
        %1761 = vmatprep.subr.bf16.mxu0 %v1736
        %1762 = vmatpush1.bf16.msra.mxu0 %v1735
        %1763 = vmatprep.subr.bf16.mxu0 %v1740
        %1764 = vmatpush1.bf16.msra.mxu0 %v1739
        %1765 = vmatprep.subr.bf16.mxu0 %v1744
        %1766 = vmatpush1.bf16.msra.mxu0 %v1743
        %1767 = vmatprep.subr.bf16.mxu0 %v1748
        %1768 = vmatpush1.bf16.msra.mxu0 %v1747
        %1769 = vmatprep.subr.bf16.mxu0 %v1752
        %1770 = vmatpush1.bf16.msra.mxu0 %v1751
        %1771 = vmatprep.subr.bf16.mxu0 0
        %1772 = vmatpush1.bf16.msra.mxu0 0
        %1773 = vmatprep.subr.bf16.mxu0 0
        %1774 = vmatpush1.bf16.msra.mxu0 0
        %1775 = vmatprep.subr.bf16.mxu0 0
        %1776 = vmatpush1.bf16.msra.mxu0 0
        %1777 = vmatprep.subr.bf16.mxu0 0
        %1778 = vmatpush1.bf16.msra.mxu0 0
        %1779 = vmatprep.subr.bf16.mxu0 0
        %1780 = vmatpush1.bf16.msra.mxu0 0
        %1781 = vmatprep.subr.bf16.mxu0 0
        %1782 = vmatpush1.bf16.msra.mxu0 0
        %1783 = vmatprep.subr.bf16.mxu0 0
        %1784 = vmatpush1.bf16.msra.mxu0 0
        %1785 = vmatprep.subr.bf16.mxu0 0
        %1786 = vmatpush1.bf16.msra.mxu0 0
        %1787 = vmatprep.mubr.bf16.mxu0 0
        %1788 = vmatmul.mubr.bf16.gmra.mrb[0].mxu0 %v1722
        %v1789 = vpop.f32.mrb[0].mxu0
        %v1790 = vadd.f32 0.0, %v1789
        %v1791 = vpop.f32.mrb[0].mxu0
        %v1792 = vadd.f32 0.0, %v1791
        %v1793 = vpop.f32.mrb[0].mxu0
        %v1794 = vpop.f32.mrb[0].mxu0
        %1795 = vdwg.mxu0
        %1796 = vmatprep.subr.bf16.mxu0 %v1726
        %1797 = vmatpush1.bf16.msra.mxu0 %v1725
        %1798 = vmatprep.subr.bf16.mxu0 %v1730
        %1799 = vmatpush1.bf16.msra.mxu0 %v1729
        %1800 = vmatprep.subr.bf16.mxu0 %v1734
        %1801 = vmatpush1.bf16.msra.mxu0 %v1733
        %1802 = vmatprep.subr.bf16.mxu0 %v1738
        %1803 = vmatpush1.bf16.msra.mxu0 %v1737
        %1804 = vmatprep.subr.bf16.mxu0 %v1742
        %1805 = vmatpush1.bf16.msra.mxu0 %v1741
        %1806 = vmatprep.subr.bf16.mxu0 %v1746
        %1807 = vmatpush1.bf16.msra.mxu0 %v1745
        %1808 = vmatprep.subr.bf16.mxu0 %v1750
        %1809 = vmatpush1.bf16.msra.mxu0 %v1749
        %1810 = vmatprep.subr.bf16.mxu0 %v1754
        %1811 = vmatpush1.bf16.msra.mxu0 %v1753
        %1812 = vmatprep.subr.bf16.mxu0 0
        %1813 = vmatpush1.bf16.msra.mxu0 0
        %1814 = vmatprep.subr.bf16.mxu0 0
        %1815 = vmatpush1.bf16.msra.mxu0 0
        %1816 = vmatprep.subr.bf16.mxu0 0
        %1817 = vmatpush1.bf16.msra.mxu0 0
        %1818 = vmatprep.subr.bf16.mxu0 0
        %1819 = vmatpush1.bf16.msra.mxu0 0
        %1820 = vmatprep.subr.bf16.mxu0 0
        %1821 = vmatpush1.bf16.msra.mxu0 0
        %1822 = vmatprep.subr.bf16.mxu0 0
        %1823 = vmatpush1.bf16.msra.mxu0 0
        %1824 = vmatprep.subr.bf16.mxu0 0
        %1825 = vmatpush1.bf16.msra.mxu0 0
        %1826 = vmatprep.subr.bf16.mxu0 0
        %1827 = vmatpush1.bf16.msra.mxu0 0
        %1828 = vmatprep.mubr.bf16.mxu0 0
        %1829 = vmatmul.mubr.bf16.gmra.mrb[0].mxu0 %v1722
        %v1830 = vpop.f32.mrb[0].mxu0
        %v1831 = vadd.f32 0.0, %v1830
        %v1832 = vpop.f32.mrb[0].mxu0
        %v1833 = vadd.f32 0.0, %v1832
        %v1834 = vpop.f32.mrb[0].mxu0
        %v1835 = vpop.f32.mrb[0].mxu0
        %1836 = vdwg.mxu0
        %v1837 = vadd.f32 %v1717, %v1790
        %v1838 = vadd.f32 %v1718, %v1792
        %v1839 = vadd.f32 %v1719, %v1831
        %v1840 = vadd.f32 %v1720, %v1833
        %v1841 = vxor.u32 %v1837, 2147483648
        %v1842 = vmul.f32 %v1841, 1.442695
        %v1843 = vpow.pop %v1842
        %v1844 = vadd.f32 %v1843, 1.0
        %v1845 = vrcp.pop %v1844
        %v1846 = vmul.f32 1.0, %v1845
        %v1847 = vxor.u32 %v1838, 2147483648
        %v1848 = vmul.f32 %v1847, 1.442695
        %v1849 = vpow.pop %v1848
        %v1850 = vadd.f32 %v1849, 1.0
        %v1851 = vrcp.pop %v1850
        %v1852 = vmul.f32 1.0, %v1851
        %v1853 = vtanh.pop %v1839
        %v1854 = vxor.u32 %v1840, 2147483648
        %v1855 = vmul.f32 %v1854, 1.442695
        %v1856 = vpow.pop %v1855
        %v1857 = vadd.f32 %v1856, 1.0
        %v1858 = vrcp.pop %v1857
        %v1859 = vmul.f32 1.0, %v1858
        %v1860 = vld [vmem:[#allocation6] sm:$0xff]
        %v1861 = vmul.f32 %v1852, %v1860
        %v1862 = vmul.f32 %v1846, %v1853
        %v1863 = vadd.f32 %v1861, %v1862
        %v1864 = vtanh.pop %v1863
        %v1865 = vmul.f32 %v1859, %v1864
        %1866 = vst [vmem:[#allocation6] sm:$0xff] %v1863
        %1867 = vst [vmem:[#allocation5] sm:$0xff] %v1865
        %s1868 = sadd.s32 %s546, 7
        %v1869 = vstv %s1868
        %vm1870 = vcmp.gt.s32.totalorder %v545, %v1869
        %v1871 = vsel %vm1870, 1, 0
        %v1872 = vcvt.s32.f32 %v1871
        %1874 = vset.pattern.permute.xlu0 0
        %1875 = vperm.xlu0 %1874, %v1872
        %v1876 = vpop.permute.xlu0 %1875
        %v1878 = vmul.f32 %v1865, %v1876
        %s1879 = scalar_lea.vmem %s220, 56 [#allocation11]
        %1880 = vst [vmem:[%s1879] sm:$0xff] %v1878
        %s1881 = sand.u32 %s119, 1
        %s1882 = scalar_lea.sflag [#allocation10], %s1881
        %s1883 = sand.u32 %s119, 1
        %s1884 = smul.addr %s1883, 64
        %s1885 = scalar_lea.vmem [#allocation11], %s1884
        // Predicated region
        $region41: #{tpu_custom_call.1} parent=31 // pred_check
          %p1886 = pneg %p129
        $region42: #{tpu_custom_call.1} parent=31 // pred_check_branch
          %1888 = sbr.rel (%p1886) target = $region44
        $region43: #{tpu_custom_call.1} parent=31 // pred_region
          %s1889 = smul.u32 8, %s27
          %s1891 = ssub.s32 1024, 1024
          %1892 = vsyncadd %s1882, %s1891
          %s1893 = sadd.s32 %s26, %s1889
          %s1894 = smul.addr %s1893, 128
          %s1895 = scalar_lea.hbm %s5, %s1894
          %s1896 = sshll.u32 %s1885, 4
          %s1897 = int_to_ptr.vmem [resolvable:$true] %s1896
          %1902 = dma.vmem_to_hbm [thread:$0]  %s1897, 1024, %s1895, %s1882, 128, 128, 8
        $region44: #{tpu_custom_call.1} parent=31 // pred_fallthru
          _
      $region32: #{tpu_custom_call.1} parent=5 // pred_fallthru
        _
      %p1903 = scmp.le.s32.totalorder 2, %s17
      // Predicated region
      $region45: #{tpu_custom_call.1} parent=5 // pred_check
        %p1904 = pneg %p1903
      $region46: #{tpu_custom_call.1} parent=5 // pred_check_branch
        %1906 = sbr.rel (%p1904) target = $region48
      $region47: #{tpu_custom_call.1} parent=5 // pred_region
        %s1907 = ssub.s32 %s17, 2
        // Predicated region
        $region49: #{tpu_custom_call.1} parent=47 // pred_check
          %p1908 = pneg %p135
        $region50: #{tpu_custom_call.1} parent=47 // pred_check_branch
          %1910 = sbr.rel (%p1908) target = $region52
        $region51: #{tpu_custom_call.1} parent=47 // pred_region
          %s1911 = sand.u32 %s120, 1
          %s1912 = scalar_lea.sflag [#allocation10], %s1911
          %s1913 = sand.u32 %s120, 1
          %s1914 = smul.addr %s1913, 64
          %s1915 = scalar_lea.vmem [#allocation11], %s1914
          %1916 = dma.done %s1912, 1024
        $region52: #{tpu_custom_call.1} parent=47 // pred_fallthru
          _
      $region48: #{tpu_custom_call.1} parent=5 // pred_fallthru
        _
    $region6: #{tpu_custom_call.1} parent=1 // loop_footer
      %s21 = sadd.s32 1, %s17
    $region7: #{tpu_custom_call.1} parent=1 // loop_footer_branch
      %16 = sbr.rel target = $region3
    $region8: #{tpu_custom_call.1} parent=1 // loop_exit
      _
    %1917 = vsyncpa [#allocation9], 1
    %s1918 = scalar_lea.sflag [#allocation9], 1
    %1919 = vsyncpa %s1918, 1
    %1920 = vsyncpa [#allocation10], 1
    %s1921 = scalar_lea.sflag [#allocation10], 1
    %1922 = vsyncpa %s1921, 1
  %1923 = vsyncmov [#allocation4]
  %s1924 = vpop.sfrf %1923
  %p1925 = scmp.eq.s32.totalorder %s1924, 0
  %p1926 = pneg %p1925
  %1928 = shalt.err (%p1926)
  %s1929 = scalar_lea.sflag [#allocation4], 1
  %1930 = vsyncmov %s1929
  %s1931 = vpop.sfrf %1930
  %p1932 = scmp.eq.s32.totalorder %s1931, 0
  %p1933 = pneg %p1932
  %1935 = shalt.err (%p1933)

</llo_original>
